<compile_context>
chip_gen: v5e
topology: v5e:2x2
jax: 0.10.0
libtpu: 0.0.40
codegen_flags: <defaults>
</compile_context>

<pallas_src>
import jax
import jax.numpy as jnp
from jax.experimental import pallas as pl
from jax.experimental.pallas import tpu as pltpu
import numpy as np


def _crf_kernel(em_ref, tags_ref, mask_ref, ends_ref, start_ref, end_ref,
                transT_ref, exptT_ref, out_ref):
    S, T, TB = em_ref.shape

    start = start_ref[...]         # (T, 1)
    end = end_ref[...]             # (T, 1)
    trans_T = transT_ref[...]      # (T, T); [t, s] = trans[s, t]
    exp_trans_T = exptT_ref[...]   # (T, T); [t', t] = exp(trans[t, t'])
    seq_ends = ends_ref[...]       # (1, TB) int32

    iota_t = jax.lax.broadcasted_iota(jnp.int32, (T, TB), 0)

    # ---- step 0 (the module requires mask[0] to be all on) ----
    em0 = em_ref[0]                                    # (T, TB)
    tag0 = tags_ref[pl.ds(0, 1), :]                    # (1, TB)
    onehot0 = (iota_t == tag0).astype(jnp.float32)     # (T, TB)

    score0 = start + em0                               # (T, TB)
    # Dense numerator accumulator; single sublane reduction after the loop.
    num_vec = onehot0 * score0
    num_vec = num_vec + jnp.where(seq_ends == 0, onehot0 * end, 0.0)

    # Normalizer carry: score == m + log(p), per-column max of p ~= 1.
    m = jnp.max(score0, axis=0, keepdims=True)         # (1, TB)
    p = jnp.exp(score0 - m)                            # (T, TB)

    def body(i, carry):
        num_vec, prev_onehot, p, m = carry

        em_i = em_ref[i]                               # (T, TB)
        tag_i = tags_ref[pl.ds(i, 1), :]               # (1, TB) int32 (raw tags)
        mask_i = mask_ref[pl.ds(i, 1), :]              # (1, TB) f32
        onehot_i = (iota_t == tag_i).astype(jnp.float32)

        # ---- numerator: trans[tags[i-1], tags[i]] + emissions[i, tags[i], b]
        # trans_cols[t, b] = trans[prev_tag[b], t]  (one small MXU matmul)
        trans_cols = jnp.dot(trans_T, prev_onehot,
                             preferred_element_type=jnp.float32)     # (T, TB)
        num_vec = num_vec + onehot_i * (em_i + trans_cols) * mask_i
        # end transition added at the last valid step of each sequence
        num_vec = num_vec + jnp.where(seq_ends == i, onehot_i * end, 0.0)

        # ---- normalizer, scaled-probability recurrence (no per-step full log)
        s = jnp.dot(exp_trans_T, p, preferred_element_type=jnp.float32)  # (T, TB)
        c = jnp.max(em_i, axis=0, keepdims=True)                          # (1, TB)
        pn = s * jnp.exp(em_i - c)                                        # (T, TB)
        r = jnp.max(pn, axis=0, keepdims=True)                            # (1, TB)
        q = pl.reciprocal(r, approx=True)                                 # rescale factor
        p_next = pn * q
        m_next = m + c - jnp.log(q)   # log(q) folded back -> exact result

        keep = mask_i > 0.0
        p = jnp.where(keep, p_next, p)
        m = jnp.where(keep, m_next, m)
        return (num_vec, onehot_i, p, m)

    unroll = True if S <= 16 else 2
    num_vec, _, p, m = jax.lax.fori_loop(
        1, S, body, (num_vec, onehot0, p, m), unroll=unroll)

    # numerator: single sublane reduction
    score_num = jnp.sum(num_vec, axis=0, keepdims=True)                   # (1, TB)

    # denominator: final logsumexp over tags with the end transitions
    end_max = jnp.max(end, axis=0, keepdims=True)                         # (1, 1)
    z = jnp.sum(p * jnp.exp(end - end_max), axis=0, keepdims=True)        # (1, TB)
    denom = m + end_max + jnp.log(z)

    out_ref[...] = score_num - denom                                      # (1, TB)


def _pick_batch_tile(S, T, B):
    """Lane-aligned batch tile sized from the real per-generation VMEM."""
    lane, sub = 128, 8
    try:
        vmem_cap = int(pltpu.get_tpu_info().vmem_capacity_bytes)
    except Exception:
        vmem_cap = 64 * 1024 * 1024      # conservative fallback (v7x-sized)
    vmem_limit = min(vmem_cap * 3 // 4, vmem_cap - (8 << 20))
    budget = vmem_limit * 7 // 10        # headroom for invariants + temps

    T_sub = ((T + sub - 1) // sub) * sub
    S_sub = ((S + sub - 1) // sub) * sub
    per_col = 2 * (S * T_sub * 4)        # emissions block, double-buffered
    per_col += 2 * 2 * (S_sub * 4)       # tags + mask blocks
    per_col += 2 * 4 + 4096              # seq_ends + in-kernel temporaries slack
    tb_budget = max(lane, (budget // per_col) // lane * lane)
    tb_budget = min(tb_budget, 1024)     # keep vreg pressure in check

    if B > tb_budget:
        tb = tb_budget
    elif B >= 2 * lane:
        # Fits in one tile, but split into >=2 lane-aligned tiles so multi-core
        # chips (v7x) shard the batch axis; near-free on single-core chips.
        tb = min(tb_budget, ((B + 2 * lane - 1) // (2 * lane)) * lane)
    else:
        tb = B                           # single full-dim block, no padding
    return tb, int(vmem_limit)


def crf_log_likelihood(emissions, tags, mask, start, end, trans, reduction="mean"):
    """emissions: (S, B, T) f32, tags: (S, B) int, mask: (S, B) {0,1}."""
    S, B, T = emissions.shape

    # torchcrf requires the first-timestep mask to be all on (best-effort check).
    try:
        first_on = bool(jnp.all(mask[0] != 0))
    except Exception:
        first_on = True                  # traced inputs: skip eager check
    if not first_on:
        raise ValueError("mask of the first timestep must all be on")

    maskf = mask.astype(jnp.float32)                                    # (S, B)
    # Batch-on-lanes layout: (S, T, B). No tag/batch padding in HBM.
    em_t = jnp.transpose(emissions.astype(jnp.float32), (0, 2, 1))      # (S, T, B)
    tg = tags.astype(jnp.int32)                                         # (S, B)
    seq_ends = (jnp.sum(maskf, axis=0).astype(jnp.int32) - 1).reshape(1, B)
    start_c = start.astype(jnp.float32).reshape(T, 1)
    end_c = end.astype(jnp.float32).reshape(T, 1)
    trans_f = trans.astype(jnp.float32)
    trans_T = trans_f.T                                                 # (T, T)
    exp_trans_T = jnp.exp(trans_f).T                                    # (T, T), hoisted out of the kernel

    tb, vmem_limit = _pick_batch_tile(S, T, B)
    grid = (pl.cdiv(B, tb),)

    grid_spec = pltpu.PrefetchScalarGridSpec(
        num_scalar_prefetch=0,
        grid=grid,
        in_specs=[
            pl.BlockSpec((S, T, tb), lambda b: (0, 0, b)),   # emissions (S, T, B)
            pl.BlockSpec((S, tb), lambda b: (0, b)),         # tags
            pl.BlockSpec((S, tb), lambda b: (0, b)),         # mask
            pl.BlockSpec((1, tb), lambda b: (0, b)),         # seq_ends
            pl.BlockSpec((T, 1), lambda b: (0, 0)),          # start
            pl.BlockSpec((T, 1), lambda b: (0, 0)),          # end
            pl.BlockSpec((T, T), lambda b: (0, 0)),          # transitions^T
            pl.BlockSpec((T, T), lambda b: (0, 0)),          # exp(transitions)^T
        ],
        out_specs=pl.BlockSpec((1, tb), lambda b: (0, b)),
    )

    out = pl.pallas_call(
        _crf_kernel,
        out_shape=jax.ShapeDtypeStruct((1, B), jnp.float32),
        grid_spec=grid_spec,
        compiler_params=pltpu.CompilerParams(
            dimension_semantics=("parallel",),
            vmem_limit_bytes=vmem_limit,
        ),
    )(em_t, tg, maskf, seq_ends, start_c, end_c, trans_T, exp_trans_T)

    llh = out[0]                                                         # (B,)

    if reduction == "none":
        return llh
    if reduction == "sum":
        return jnp.sum(llh)
    if reduction == "mean":
        return jnp.mean(llh)
    # token_mean
    return jnp.sum(llh) / jnp.sum(mask.astype(jnp.float32))


def crf_log_likelihood_ref(emissions, tags, mask, start, end, trans):
    """Pure-JAX reference mirroring the PyTorch implementation."""
    S, B, T = emissions.shape
    maskf = mask.astype(jnp.float32)
    ar = jnp.arange(B)
    # numerator
    score = start[tags[0]] + emissions[0, ar, tags[0]]
    for i in range(1, S):
        score = score + trans[tags[i - 1], tags[i]] * maskf[i]
        score = score + emissions[i, ar, tags[i]] * maskf[i]
    seq_ends = maskf.sum(0).astype(jnp.int32) - 1
    last_tags = tags[seq_ends, ar]
    score = score + end[last_tags]
    # normalizer
    nsc = start + emissions[0]
    for i in range(1, S):
        nxt = jax.nn.logsumexp(
            nsc[:, :, None] + trans[None, :, :] + emissions[i][:, None, :], axis=1)
        nsc = jnp.where(maskf[i][:, None] > 0, nxt, nsc)
    denom = jax.nn.logsumexp(nsc + end, axis=1)
    return score - denom


if __name__ == "__main__":
    num_tags = 5
    seq_len = 8
    batch = 2

    key = jax.random.PRNGKey(0)
    k_em, k_tags, k_st, k_en, k_tr = jax.random.split(key, 5)

    # Parameters: uniform(-0.1, 0.1) like nn.init.uniform_ in reset_parameters().
    start_transitions = jax.random.uniform(k_st, (num_tags,), minval=-0.1, maxval=0.1)
    end_transitions = jax.random.uniform(k_en, (num_tags,), minval=-0.1, maxval=0.1)
    transitions = jax.random.uniform(k_tr, (num_tags, num_tags), minval=-0.1, maxval=0.1)

    # Inputs (batch_first=False layout).
    emissions = jax.random.normal(k_em, (seq_len, batch, num_tags), dtype=jnp.float32)
    tags = jax.random.randint(k_tags, (seq_len, batch), 0, num_tags, dtype=jnp.int32)
    # mask: first timestep all on (required by the module); batch 1 padded at the end.
    mask = np.ones((seq_len, batch), dtype=np.int32)
    mask[seq_len - 2:, 1] = 0
    mask = jnp.asarray(mask)

    out = crf_log_likelihood(emissions, tags, mask,
                             start_transitions, end_transitions, transitions,
                             reduction="mean")
    out = jax.block_until_ready(out)

    ref = jnp.mean(crf_log_likelihood_ref(
        emissions, tags, mask, start_transitions, end_transitions, transitions))
    np.testing.assert_allclose(np.asarray(out), np.asarray(ref), rtol=1e-5, atol=1e-5)

    # Also check per-sequence log-likelihoods (reduction="none").
    out_none = jax.block_until_ready(
        crf_log_likelihood(emissions, tags, mask,
                           start_transitions, end_transitions, transitions,
                           reduction="none"))
    ref_none = crf_log_likelihood_ref(
        emissions, tags, mask, start_transitions, end_transitions, transitions)
    np.testing.assert_allclose(np.asarray(out_none), np.asarray(ref_none),
                               rtol=1e-5, atol=1e-5)

    print("KERNEL_OK")
</pallas_src>

<mosaic_0001>
module attributes {stable_mosaic.version = 11 : i64} {
  func.func @_crf_kernel(%arg0: i32, %arg1: memref<8x5x2xf32, #tpu.memory_space<vmem>>, %arg2: memref<8x2xi32, #tpu.memory_space<vmem>>, %arg3: memref<8x2xf32, #tpu.memory_space<vmem>>, %arg4: memref<1x2xi32, #tpu.memory_space<vmem>>, %arg5: memref<5x1xf32, #tpu.memory_space<vmem>>, %arg6: memref<5x1xf32, #tpu.memory_space<vmem>>, %arg7: memref<5x5xf32, #tpu.memory_space<vmem>>, %arg8: memref<5x5xf32, #tpu.memory_space<vmem>>, %arg9: memref<1x2xf32, #tpu.memory_space<vmem>>) attributes {dimension_semantics = [#tpu.dimension_semantics<parallel>], iteration_bounds = array<i64: 1>, scalar_prefetch = 0 : i64, scratch_operands = 0 : i64, tpu.core_type = #tpu.core_type<tc>, window_params = [{transform_indices = @transform_0, window_bounds = array<i64: 8, 5, 2>}, {transform_indices = @transform_1, window_bounds = array<i64: 8, 2>}, {transform_indices = @transform_2, window_bounds = array<i64: 8, 2>}, {transform_indices = @transform_3, window_bounds = array<i64: 1, 2>}, {pipeline_mode = #tpu.pipeline_mode<synchronous>, transform_indices = @transform_4, window_bounds = array<i64: 5, 1>}, {pipeline_mode = #tpu.pipeline_mode<synchronous>, transform_indices = @transform_5, window_bounds = array<i64: 5, 1>}, {pipeline_mode = #tpu.pipeline_mode<synchronous>, transform_indices = @transform_6, window_bounds = array<i64: 5, 5>}, {pipeline_mode = #tpu.pipeline_mode<synchronous>, transform_indices = @transform_7, window_bounds = array<i64: 5, 5>}, {transform_indices = @transform_8, window_bounds = array<i64: 1, 2>}]} {
    %c0 = arith.constant 0 : index
    %c0_0 = arith.constant 0 : index
    %0 = vector.load %arg5[%c0, %c0_0] : memref<5x1xf32, #tpu.memory_space<vmem>>, vector<5x1xf32>
    %c0_1 = arith.constant 0 : index
    %c0_2 = arith.constant 0 : index
    %1 = vector.load %arg6[%c0_1, %c0_2] : memref<5x1xf32, #tpu.memory_space<vmem>>, vector<5x1xf32>
    %c0_3 = arith.constant 0 : index
    %c0_4 = arith.constant 0 : index
    %2 = vector.load %arg7[%c0_3, %c0_4] : memref<5x5xf32, #tpu.memory_space<vmem>>, vector<5x5xf32>
    %c0_5 = arith.constant 0 : index
    %c0_6 = arith.constant 0 : index
    %3 = vector.load %arg8[%c0_5, %c0_6] : memref<5x5xf32, #tpu.memory_space<vmem>>, vector<5x5xf32>
    %c0_7 = arith.constant 0 : index
    %c0_8 = arith.constant 0 : index
    %4 = vector.load %arg4[%c0_7, %c0_8] : memref<1x2xi32, #tpu.memory_space<vmem>>, vector<1x2xi32>
    %5 = tpu.iota {dimensions = array<i32: 0>} : vector<5x2xi32>
    %c0_9 = arith.constant 0 : index
    %c0_10 = arith.constant 0 : index
    %c0_11 = arith.constant 0 : index
    %6 = vector.load %arg1[%c0_9, %c0_10, %c0_11] : memref<8x5x2xf32, #tpu.memory_space<vmem>>, vector<1x5x2xf32>
    %7 = vector.shape_cast %6 : vector<1x5x2xf32> to vector<5x2xf32>
    %c0_12 = arith.constant 0 : index
    %c0_13 = arith.constant 0 : index
    %8 = vector.load %arg2[%c0_12, %c0_13] : memref<8x2xi32, #tpu.memory_space<vmem>>, vector<1x2xi32>
    %9 = vector.broadcast %8 : vector<1x2xi32> to vector<5x2xi32>
    %10 = arith.cmpi eq, %5, %9 : vector<5x2xi32>
    %11 = arith.extui %10 : vector<5x2xi1> to vector<5x2xi32>
    %12 = arith.sitofp %11 : vector<5x2xi32> to vector<5x2xf32>
    %13 = vector.broadcast %0 : vector<5x1xf32> to vector<5x2xf32>
    %14 = arith.addf %13, %7 : vector<5x2xf32>
    %15 = arith.mulf %12, %14 : vector<5x2xf32>
    %c0_i32 = arith.constant 0 : i32
    %16 = vector.broadcast %c0_i32 : i32 to vector<1x2xi32>
    %17 = arith.cmpi eq, %4, %16 : vector<1x2xi32>
    %18 = vector.broadcast %1 : vector<5x1xf32> to vector<5x2xf32>
    %19 = arith.mulf %12, %18 : vector<5x2xf32>
    %cst = arith.constant 0.000000e+00 : f32
    %20 = vector.shape_cast %17 : vector<1x2xi1> to vector<1x2xi1>
    %21 = vector.broadcast %20 : vector<1x2xi1> to vector<5x2xi1>
    %22 = vector.broadcast %cst : f32 to vector<5x2xf32>
    %23 = arith.select %21, %19, %22 : vector<5x2xi1>, vector<5x2xf32>
    %24 = arith.addf %15, %23 : vector<5x2xf32>
    %cst_14 = arith.constant dense<0xFF800000> : vector<2xf32>
    %25 = vector.multi_reduction <maximumf>, %14, %cst_14 [0] : vector<5x2xf32> to vector<2xf32>
    %26 = vector.shape_cast %25 : vector<2xf32> to vector<1x2xf32>
    %27 = vector.broadcast %26 : vector<1x2xf32> to vector<5x2xf32>
    %28 = arith.subf %14, %27 : vector<5x2xf32>
    %29 = math.exp %28 : vector<5x2xf32>
    %c1_i32 = arith.constant 1 : i32
    %30 = arith.index_cast %c1_i32 : i32 to index
    %c0_15 = arith.constant 0 : index
    %c0_16 = arith.constant 0 : index
    %31 = vector.load %arg1[%30, %c0_15, %c0_16] : memref<8x5x2xf32, #tpu.memory_space<vmem>>, vector<1x5x2xf32>
    %32 = vector.shape_cast %31 : vector<1x5x2xf32> to vector<5x2xf32>
    %33 = arith.index_cast %c1_i32 : i32 to index
    %c0_17 = arith.constant 0 : index
    %34 = vector.load %arg2[%33, %c0_17] : memref<8x2xi32, #tpu.memory_space<vmem>>, vector<1x2xi32>
    %35 = arith.index_cast %c1_i32 : i32 to index
    %c0_18 = arith.constant 0 : index
    %36 = vector.load %arg3[%35, %c0_18] : memref<8x2xf32, #tpu.memory_space<vmem>>, vector<1x2xf32>
    %37 = vector.broadcast %34 : vector<1x2xi32> to vector<5x2xi32>
    %38 = arith.cmpi eq, %5, %37 : vector<5x2xi32>
    %39 = arith.extui %38 : vector<5x2xi1> to vector<5x2xi32>
    %40 = arith.sitofp %39 : vector<5x2xi32> to vector<5x2xf32>
    %cst_19 = arith.constant dense<0.000000e+00> : vector<5x2xf32>
    %41 = tpu.matmul %2, %12, %cst_19 {dimension_numbers = #tpu.dot_dimension_numbers<[1], [0], [0], [1], [0, 0, 1, 1], [], []>} : vector<5x5xf32>, vector<5x2xf32>, vector<5x2xf32> -> vector<5x2xf32>
    %42 = arith.addf %32, %41 : vector<5x2xf32>
    %43 = arith.mulf %40, %42 : vector<5x2xf32>
    %44 = vector.broadcast %36 : vector<1x2xf32> to vector<5x2xf32>
    %45 = arith.mulf %43, %44 : vector<5x2xf32>
    %46 = arith.addf %24, %45 : vector<5x2xf32>
    %47 = vector.broadcast %c1_i32 : i32 to vector<1x2xi32>
    %48 = arith.cmpi eq, %4, %47 : vector<1x2xi32>
    %49 = vector.broadcast %1 : vector<5x1xf32> to vector<5x2xf32>
    %50 = arith.mulf %40, %49 : vector<5x2xf32>
    %cst_20 = arith.constant 0.000000e+00 : f32
    %51 = vector.shape_cast %48 : vector<1x2xi1> to vector<1x2xi1>
    %52 = vector.broadcast %51 : vector<1x2xi1> to vector<5x2xi1>
    %53 = vector.broadcast %cst_20 : f32 to vector<5x2xf32>
    %54 = arith.select %52, %50, %53 : vector<5x2xi1>, vector<5x2xf32>
    %55 = arith.addf %46, %54 : vector<5x2xf32>
    %cst_21 = arith.constant dense<0.000000e+00> : vector<5x2xf32>
    %56 = tpu.matmul %3, %29, %cst_21 {dimension_numbers = #tpu.dot_dimension_numbers<[1], [0], [0], [1], [0, 0, 1, 1], [], []>} : vector<5x5xf32>, vector<5x2xf32>, vector<5x2xf32> -> vector<5x2xf32>
    %cst_22 = arith.constant dense<0xFF800000> : vector<2xf32>
    %57 = vector.multi_reduction <maximumf>, %32, %cst_22 [0] : vector<5x2xf32> to vector<2xf32>
    %58 = vector.shape_cast %57 : vector<2xf32> to vector<1x2xf32>
    %59 = vector.broadcast %58 : vector<1x2xf32> to vector<5x2xf32>
    %60 = arith.subf %32, %59 : vector<5x2xf32>
    %61 = math.exp %60 : vector<5x2xf32>
    %62 = arith.mulf %56, %61 : vector<5x2xf32>
    %cst_23 = arith.constant dense<0xFF800000> : vector<2xf32>
    %63 = vector.multi_reduction <maximumf>, %62, %cst_23 [0] : vector<5x2xf32> to vector<2xf32>
    %64 = vector.shape_cast %63 : vector<2xf32> to vector<1x2xf32>
    %65 = tpu.reciprocal %64 {approx = true} : vector<1x2xf32> -> vector<1x2xf32>
    %66 = vector.broadcast %65 : vector<1x2xf32> to vector<5x2xf32>
    %67 = arith.mulf %62, %66 : vector<5x2xf32>
    %68 = arith.addf %26, %58 : vector<1x2xf32>
    %69 = math.log %65 : vector<1x2xf32>
    %70 = arith.subf %68, %69 : vector<1x2xf32>
    %cst_24 = arith.constant 0.000000e+00 : f32
    %71 = vector.broadcast %cst_24 : f32 to vector<1x2xf32>
    %72 = arith.cmpf ogt, %36, %71 : vector<1x2xf32>
    %73 = vector.shape_cast %72 : vector<1x2xi1> to vector<1x2xi1>
    %74 = vector.broadcast %73 : vector<1x2xi1> to vector<5x2xi1>
    %75 = arith.select %74, %67, %29 : vector<5x2xi1>, vector<5x2xf32>
    %76 = arith.select %72, %70, %26 : vector<1x2xi1>, vector<1x2xf32>
    %c2_i32 = arith.constant 2 : i32
    %77 = arith.index_cast %c2_i32 : i32 to index
    %c0_25 = arith.constant 0 : index
    %c0_26 = arith.constant 0 : index
    %78 = vector.load %arg1[%77, %c0_25, %c0_26] : memref<8x5x2xf32, #tpu.memory_space<vmem>>, vector<1x5x2xf32>
    %79 = vector.shape_cast %78 : vector<1x5x2xf32> to vector<5x2xf32>
    %80 = arith.index_cast %c2_i32 : i32 to index
    %c0_27 = arith.constant 0 : index
    %81 = vector.load %arg2[%80, %c0_27] : memref<8x2xi32, #tpu.memory_space<vmem>>, vector<1x2xi32>
    %82 = arith.index_cast %c2_i32 : i32 to index
    %c0_28 = arith.constant 0 : index
    %83 = vector.load %arg3[%82, %c0_28] : memref<8x2xf32, #tpu.memory_space<vmem>>, vector<1x2xf32>
    %84 = vector.broadcast %81 : vector<1x2xi32> to vector<5x2xi32>
    %85 = arith.cmpi eq, %5, %84 : vector<5x2xi32>
    %86 = arith.extui %85 : vector<5x2xi1> to vector<5x2xi32>
    %87 = arith.sitofp %86 : vector<5x2xi32> to vector<5x2xf32>
    %cst_29 = arith.constant dense<0.000000e+00> : vector<5x2xf32>
    %88 = tpu.matmul %2, %40, %cst_29 {dimension_numbers = #tpu.dot_dimension_numbers<[1], [0], [0], [1], [0, 0, 1, 1], [], []>} : vector<5x5xf32>, vector<5x2xf32>, vector<5x2xf32> -> vector<5x2xf32>
    %89 = arith.addf %79, %88 : vector<5x2xf32>
    %90 = arith.mulf %87, %89 : vector<5x2xf32>
    %91 = vector.broadcast %83 : vector<1x2xf32> to vector<5x2xf32>
    %92 = arith.mulf %90, %91 : vector<5x2xf32>
    %93 = arith.addf %55, %92 : vector<5x2xf32>
    %94 = vector.broadcast %c2_i32 : i32 to vector<1x2xi32>
    %95 = arith.cmpi eq, %4, %94 : vector<1x2xi32>
    %96 = vector.broadcast %1 : vector<5x1xf32> to vector<5x2xf32>
    %97 = arith.mulf %87, %96 : vector<5x2xf32>
    %cst_30 = arith.constant 0.000000e+00 : f32
    %98 = vector.shape_cast %95 : vector<1x2xi1> to vector<1x2xi1>
    %99 = vector.broadcast %98 : vector<1x2xi1> to vector<5x2xi1>
    %100 = vector.broadcast %cst_30 : f32 to vector<5x2xf32>
    %101 = arith.select %99, %97, %100 : vector<5x2xi1>, vector<5x2xf32>
    %102 = arith.addf %93, %101 : vector<5x2xf32>
    %cst_31 = arith.constant dense<0.000000e+00> : vector<5x2xf32>
    %103 = tpu.matmul %3, %75, %cst_31 {dimension_numbers = #tpu.dot_dimension_numbers<[1], [0], [0], [1], [0, 0, 1, 1], [], []>} : vector<5x5xf32>, vector<5x2xf32>, vector<5x2xf32> -> vector<5x2xf32>
    %cst_32 = arith.constant dense<0xFF800000> : vector<2xf32>
    %104 = vector.multi_reduction <maximumf>, %79, %cst_32 [0] : vector<5x2xf32> to vector<2xf32>
    %105 = vector.shape_cast %104 : vector<2xf32> to vector<1x2xf32>
    %106 = vector.broadcast %105 : vector<1x2xf32> to vector<5x2xf32>
    %107 = arith.subf %79, %106 : vector<5x2xf32>
    %108 = math.exp %107 : vector<5x2xf32>
    %109 = arith.mulf %103, %108 : vector<5x2xf32>
    %cst_33 = arith.constant dense<0xFF800000> : vector<2xf32>
    %110 = vector.multi_reduction <maximumf>, %109, %cst_33 [0] : vector<5x2xf32> to vector<2xf32>
    %111 = vector.shape_cast %110 : vector<2xf32> to vector<1x2xf32>
    %112 = tpu.reciprocal %111 {approx = true} : vector<1x2xf32> -> vector<1x2xf32>
    %113 = vector.broadcast %112 : vector<1x2xf32> to vector<5x2xf32>
    %114 = arith.mulf %109, %113 : vector<5x2xf32>
    %115 = arith.addf %76, %105 : vector<1x2xf32>
    %116 = math.log %112 : vector<1x2xf32>
    %117 = arith.subf %115, %116 : vector<1x2xf32>
    %cst_34 = arith.constant 0.000000e+00 : f32
    %118 = vector.broadcast %cst_34 : f32 to vector<1x2xf32>
    %119 = arith.cmpf ogt, %83, %118 : vector<1x2xf32>
    %120 = vector.shape_cast %119 : vector<1x2xi1> to vector<1x2xi1>
    %121 = vector.broadcast %120 : vector<1x2xi1> to vector<5x2xi1>
    %122 = arith.select %121, %114, %75 : vector<5x2xi1>, vector<5x2xf32>
    %123 = arith.select %119, %117, %76 : vector<1x2xi1>, vector<1x2xf32>
    %c3_i32 = arith.constant 3 : i32
    %124 = arith.index_cast %c3_i32 : i32 to index
    %c0_35 = arith.constant 0 : index
    %c0_36 = arith.constant 0 : index
    %125 = vector.load %arg1[%124, %c0_35, %c0_36] : memref<8x5x2xf32, #tpu.memory_space<vmem>>, vector<1x5x2xf32>
    %126 = vector.shape_cast %125 : vector<1x5x2xf32> to vector<5x2xf32>
    %127 = arith.index_cast %c3_i32 : i32 to index
    %c0_37 = arith.constant 0 : index
    %128 = vector.load %arg2[%127, %c0_37] : memref<8x2xi32, #tpu.memory_space<vmem>>, vector<1x2xi32>
    %129 = arith.index_cast %c3_i32 : i32 to index
    %c0_38 = arith.constant 0 : index
    %130 = vector.load %arg3[%129, %c0_38] : memref<8x2xf32, #tpu.memory_space<vmem>>, vector<1x2xf32>
    %131 = vector.broadcast %128 : vector<1x2xi32> to vector<5x2xi32>
    %132 = arith.cmpi eq, %5, %131 : vector<5x2xi32>
    %133 = arith.extui %132 : vector<5x2xi1> to vector<5x2xi32>
    %134 = arith.sitofp %133 : vector<5x2xi32> to vector<5x2xf32>
    %cst_39 = arith.constant dense<0.000000e+00> : vector<5x2xf32>
    %135 = tpu.matmul %2, %87, %cst_39 {dimension_numbers = #tpu.dot_dimension_numbers<[1], [0], [0], [1], [0, 0, 1, 1], [], []>} : vector<5x5xf32>, vector<5x2xf32>, vector<5x2xf32> -> vector<5x2xf32>
    %136 = arith.addf %126, %135 : vector<5x2xf32>
    %137 = arith.mulf %134, %136 : vector<5x2xf32>
    %138 = vector.broadcast %130 : vector<1x2xf32> to vector<5x2xf32>
    %139 = arith.mulf %137, %138 : vector<5x2xf32>
    %140 = arith.addf %102, %139 : vector<5x2xf32>
    %141 = vector.broadcast %c3_i32 : i32 to vector<1x2xi32>
    %142 = arith.cmpi eq, %4, %141 : vector<1x2xi32>
    %143 = vector.broadcast %1 : vector<5x1xf32> to vector<5x2xf32>
    %144 = arith.mulf %134, %143 : vector<5x2xf32>
    %cst_40 = arith.constant 0.000000e+00 : f32
    %145 = vector.shape_cast %142 : vector<1x2xi1> to vector<1x2xi1>
    %146 = vector.broadcast %145 : vector<1x2xi1> to vector<5x2xi1>
    %147 = vector.broadcast %cst_40 : f32 to vector<5x2xf32>
    %148 = arith.select %146, %144, %147 : vector<5x2xi1>, vector<5x2xf32>
    %149 = arith.addf %140, %148 : vector<5x2xf32>
    %cst_41 = arith.constant dense<0.000000e+00> : vector<5x2xf32>
    %150 = tpu.matmul %3, %122, %cst_41 {dimension_numbers = #tpu.dot_dimension_numbers<[1], [0], [0], [1], [0, 0, 1, 1], [], []>} : vector<5x5xf32>, vector<5x2xf32>, vector<5x2xf32> -> vector<5x2xf32>
    %cst_42 = arith.constant dense<0xFF800000> : vector<2xf32>
    %151 = vector.multi_reduction <maximumf>, %126, %cst_42 [0] : vector<5x2xf32> to vector<2xf32>
    %152 = vector.shape_cast %151 : vector<2xf32> to vector<1x2xf32>
    %153 = vector.broadcast %152 : vector<1x2xf32> to vector<5x2xf32>
    %154 = arith.subf %126, %153 : vector<5x2xf32>
    %155 = math.exp %154 : vector<5x2xf32>
    %156 = arith.mulf %150, %155 : vector<5x2xf32>
    %cst_43 = arith.constant dense<0xFF800000> : vector<2xf32>
    %157 = vector.multi_reduction <maximumf>, %156, %cst_43 [0] : vector<5x2xf32> to vector<2xf32>
    %158 = vector.shape_cast %157 : vector<2xf32> to vector<1x2xf32>
    %159 = tpu.reciprocal %158 {approx = true} : vector<1x2xf32> -> vector<1x2xf32>
    %160 = vector.broadcast %159 : vector<1x2xf32> to vector<5x2xf32>
    %161 = arith.mulf %156, %160 : vector<5x2xf32>
    %162 = arith.addf %123, %152 : vector<1x2xf32>
    %163 = math.log %159 : vector<1x2xf32>
    %164 = arith.subf %162, %163 : vector<1x2xf32>
    %cst_44 = arith.constant 0.000000e+00 : f32
    %165 = vector.broadcast %cst_44 : f32 to vector<1x2xf32>
    %166 = arith.cmpf ogt, %130, %165 : vector<1x2xf32>
    %167 = vector.shape_cast %166 : vector<1x2xi1> to vector<1x2xi1>
    %168 = vector.broadcast %167 : vector<1x2xi1> to vector<5x2xi1>
    %169 = arith.select %168, %161, %122 : vector<5x2xi1>, vector<5x2xf32>
    %170 = arith.select %166, %164, %123 : vector<1x2xi1>, vector<1x2xf32>
    %c4_i32 = arith.constant 4 : i32
    %171 = arith.index_cast %c4_i32 : i32 to index
    %c0_45 = arith.constant 0 : index
    %c0_46 = arith.constant 0 : index
    %172 = vector.load %arg1[%171, %c0_45, %c0_46] : memref<8x5x2xf32, #tpu.memory_space<vmem>>, vector<1x5x2xf32>
    %173 = vector.shape_cast %172 : vector<1x5x2xf32> to vector<5x2xf32>
    %174 = arith.index_cast %c4_i32 : i32 to index
    %c0_47 = arith.constant 0 : index
    %175 = vector.load %arg2[%174, %c0_47] : memref<8x2xi32, #tpu.memory_space<vmem>>, vector<1x2xi32>
    %176 = arith.index_cast %c4_i32 : i32 to index
    %c0_48 = arith.constant 0 : index
    %177 = vector.load %arg3[%176, %c0_48] : memref<8x2xf32, #tpu.memory_space<vmem>>, vector<1x2xf32>
    %178 = vector.broadcast %175 : vector<1x2xi32> to vector<5x2xi32>
    %179 = arith.cmpi eq, %5, %178 : vector<5x2xi32>
    %180 = arith.extui %179 : vector<5x2xi1> to vector<5x2xi32>
    %181 = arith.sitofp %180 : vector<5x2xi32> to vector<5x2xf32>
    %cst_49 = arith.constant dense<0.000000e+00> : vector<5x2xf32>
    %182 = tpu.matmul %2, %134, %cst_49 {dimension_numbers = #tpu.dot_dimension_numbers<[1], [0], [0], [1], [0, 0, 1, 1], [], []>} : vector<5x5xf32>, vector<5x2xf32>, vector<5x2xf32> -> vector<5x2xf32>
    %183 = arith.addf %173, %182 : vector<5x2xf32>
    %184 = arith.mulf %181, %183 : vector<5x2xf32>
    %185 = vector.broadcast %177 : vector<1x2xf32> to vector<5x2xf32>
    %186 = arith.mulf %184, %185 : vector<5x2xf32>
    %187 = arith.addf %149, %186 : vector<5x2xf32>
    %188 = vector.broadcast %c4_i32 : i32 to vector<1x2xi32>
    %189 = arith.cmpi eq, %4, %188 : vector<1x2xi32>
    %190 = vector.broadcast %1 : vector<5x1xf32> to vector<5x2xf32>
    %191 = arith.mulf %181, %190 : vector<5x2xf32>
    %cst_50 = arith.constant 0.000000e+00 : f32
    %192 = vector.shape_cast %189 : vector<1x2xi1> to vector<1x2xi1>
    %193 = vector.broadcast %192 : vector<1x2xi1> to vector<5x2xi1>
    %194 = vector.broadcast %cst_50 : f32 to vector<5x2xf32>
    %195 = arith.select %193, %191, %194 : vector<5x2xi1>, vector<5x2xf32>
    %196 = arith.addf %187, %195 : vector<5x2xf32>
    %cst_51 = arith.constant dense<0.000000e+00> : vector<5x2xf32>
    %197 = tpu.matmul %3, %169, %cst_51 {dimension_numbers = #tpu.dot_dimension_numbers<[1], [0], [0], [1], [0, 0, 1, 1], [], []>} : vector<5x5xf32>, vector<5x2xf32>, vector<5x2xf32> -> vector<5x2xf32>
    %cst_52 = arith.constant dense<0xFF800000> : vector<2xf32>
    %198 = vector.multi_reduction <maximumf>, %173, %cst_52 [0] : vector<5x2xf32> to vector<2xf32>
    %199 = vector.shape_cast %198 : vector<2xf32> to vector<1x2xf32>
    %200 = vector.broadcast %199 : vector<1x2xf32> to vector<5x2xf32>
    %201 = arith.subf %173, %200 : vector<5x2xf32>
    %202 = math.exp %201 : vector<5x2xf32>
    %203 = arith.mulf %197, %202 : vector<5x2xf32>
    %cst_53 = arith.constant dense<0xFF800000> : vector<2xf32>
    %204 = vector.multi_reduction <maximumf>, %203, %cst_53 [0] : vector<5x2xf32> to vector<2xf32>
    %205 = vector.shape_cast %204 : vector<2xf32> to vector<1x2xf32>
    %206 = tpu.reciprocal %205 {approx = true} : vector<1x2xf32> -> vector<1x2xf32>
    %207 = vector.broadcast %206 : vector<1x2xf32> to vector<5x2xf32>
    %208 = arith.mulf %203, %207 : vector<5x2xf32>
    %209 = arith.addf %170, %199 : vector<1x2xf32>
    %210 = math.log %206 : vector<1x2xf32>
    %211 = arith.subf %209, %210 : vector<1x2xf32>
    %cst_54 = arith.constant 0.000000e+00 : f32
    %212 = vector.broadcast %cst_54 : f32 to vector<1x2xf32>
    %213 = arith.cmpf ogt, %177, %212 : vector<1x2xf32>
    %214 = vector.shape_cast %213 : vector<1x2xi1> to vector<1x2xi1>
    %215 = vector.broadcast %214 : vector<1x2xi1> to vector<5x2xi1>
    %216 = arith.select %215, %208, %169 : vector<5x2xi1>, vector<5x2xf32>
    %217 = arith.select %213, %211, %170 : vector<1x2xi1>, vector<1x2xf32>
    %c5_i32 = arith.constant 5 : i32
    %218 = arith.index_cast %c5_i32 : i32 to index
    %c0_55 = arith.constant 0 : index
    %c0_56 = arith.constant 0 : index
    %219 = vector.load %arg1[%218, %c0_55, %c0_56] : memref<8x5x2xf32, #tpu.memory_space<vmem>>, vector<1x5x2xf32>
    %220 = vector.shape_cast %219 : vector<1x5x2xf32> to vector<5x2xf32>
    %221 = arith.index_cast %c5_i32 : i32 to index
    %c0_57 = arith.constant 0 : index
    %222 = vector.load %arg2[%221, %c0_57] : memref<8x2xi32, #tpu.memory_space<vmem>>, vector<1x2xi32>
    %223 = arith.index_cast %c5_i32 : i32 to index
    %c0_58 = arith.constant 0 : index
    %224 = vector.load %arg3[%223, %c0_58] : memref<8x2xf32, #tpu.memory_space<vmem>>, vector<1x2xf32>
    %225 = vector.broadcast %222 : vector<1x2xi32> to vector<5x2xi32>
    %226 = arith.cmpi eq, %5, %225 : vector<5x2xi32>
    %227 = arith.extui %226 : vector<5x2xi1> to vector<5x2xi32>
    %228 = arith.sitofp %227 : vector<5x2xi32> to vector<5x2xf32>
    %cst_59 = arith.constant dense<0.000000e+00> : vector<5x2xf32>
    %229 = tpu.matmul %2, %181, %cst_59 {dimension_numbers = #tpu.dot_dimension_numbers<[1], [0], [0], [1], [0, 0, 1, 1], [], []>} : vector<5x5xf32>, vector<5x2xf32>, vector<5x2xf32> -> vector<5x2xf32>
    %230 = arith.addf %220, %229 : vector<5x2xf32>
    %231 = arith.mulf %228, %230 : vector<5x2xf32>
    %232 = vector.broadcast %224 : vector<1x2xf32> to vector<5x2xf32>
    %233 = arith.mulf %231, %232 : vector<5x2xf32>
    %234 = arith.addf %196, %233 : vector<5x2xf32>
    %235 = vector.broadcast %c5_i32 : i32 to vector<1x2xi32>
    %236 = arith.cmpi eq, %4, %235 : vector<1x2xi32>
    %237 = vector.broadcast %1 : vector<5x1xf32> to vector<5x2xf32>
    %238 = arith.mulf %228, %237 : vector<5x2xf32>
    %cst_60 = arith.constant 0.000000e+00 : f32
    %239 = vector.shape_cast %236 : vector<1x2xi1> to vector<1x2xi1>
    %240 = vector.broadcast %239 : vector<1x2xi1> to vector<5x2xi1>
    %241 = vector.broadcast %cst_60 : f32 to vector<5x2xf32>
    %242 = arith.select %240, %238, %241 : vector<5x2xi1>, vector<5x2xf32>
    %243 = arith.addf %234, %242 : vector<5x2xf32>
    %cst_61 = arith.constant dense<0.000000e+00> : vector<5x2xf32>
    %244 = tpu.matmul %3, %216, %cst_61 {dimension_numbers = #tpu.dot_dimension_numbers<[1], [0], [0], [1], [0, 0, 1, 1], [], []>} : vector<5x5xf32>, vector<5x2xf32>, vector<5x2xf32> -> vector<5x2xf32>
    %cst_62 = arith.constant dense<0xFF800000> : vector<2xf32>
    %245 = vector.multi_reduction <maximumf>, %220, %cst_62 [0] : vector<5x2xf32> to vector<2xf32>
    %246 = vector.shape_cast %245 : vector<2xf32> to vector<1x2xf32>
    %247 = vector.broadcast %246 : vector<1x2xf32> to vector<5x2xf32>
    %248 = arith.subf %220, %247 : vector<5x2xf32>
    %249 = math.exp %248 : vector<5x2xf32>
    %250 = arith.mulf %244, %249 : vector<5x2xf32>
    %cst_63 = arith.constant dense<0xFF800000> : vector<2xf32>
    %251 = vector.multi_reduction <maximumf>, %250, %cst_63 [0] : vector<5x2xf32> to vector<2xf32>
    %252 = vector.shape_cast %251 : vector<2xf32> to vector<1x2xf32>
    %253 = tpu.reciprocal %252 {approx = true} : vector<1x2xf32> -> vector<1x2xf32>
    %254 = vector.broadcast %253 : vector<1x2xf32> to vector<5x2xf32>
    %255 = arith.mulf %250, %254 : vector<5x2xf32>
    %256 = arith.addf %217, %246 : vector<1x2xf32>
    %257 = math.log %253 : vector<1x2xf32>
    %258 = arith.subf %256, %257 : vector<1x2xf32>
    %cst_64 = arith.constant 0.000000e+00 : f32
    %259 = vector.broadcast %cst_64 : f32 to vector<1x2xf32>
    %260 = arith.cmpf ogt, %224, %259 : vector<1x2xf32>
    %261 = vector.shape_cast %260 : vector<1x2xi1> to vector<1x2xi1>
    %262 = vector.broadcast %261 : vector<1x2xi1> to vector<5x2xi1>
    %263 = arith.select %262, %255, %216 : vector<5x2xi1>, vector<5x2xf32>
    %264 = arith.select %260, %258, %217 : vector<1x2xi1>, vector<1x2xf32>
    %c6_i32 = arith.constant 6 : i32
    %265 = arith.index_cast %c6_i32 : i32 to index
    %c0_65 = arith.constant 0 : index
    %c0_66 = arith.constant 0 : index
    %266 = vector.load %arg1[%265, %c0_65, %c0_66] : memref<8x5x2xf32, #tpu.memory_space<vmem>>, vector<1x5x2xf32>
    %267 = vector.shape_cast %266 : vector<1x5x2xf32> to vector<5x2xf32>
    %268 = arith.index_cast %c6_i32 : i32 to index
    %c0_67 = arith.constant 0 : index
    %269 = vector.load %arg2[%268, %c0_67] : memref<8x2xi32, #tpu.memory_space<vmem>>, vector<1x2xi32>
    %270 = arith.index_cast %c6_i32 : i32 to index
    %c0_68 = arith.constant 0 : index
    %271 = vector.load %arg3[%270, %c0_68] : memref<8x2xf32, #tpu.memory_space<vmem>>, vector<1x2xf32>
    %272 = vector.broadcast %269 : vector<1x2xi32> to vector<5x2xi32>
    %273 = arith.cmpi eq, %5, %272 : vector<5x2xi32>
    %274 = arith.extui %273 : vector<5x2xi1> to vector<5x2xi32>
    %275 = arith.sitofp %274 : vector<5x2xi32> to vector<5x2xf32>
    %cst_69 = arith.constant dense<0.000000e+00> : vector<5x2xf32>
    %276 = tpu.matmul %2, %228, %cst_69 {dimension_numbers = #tpu.dot_dimension_numbers<[1], [0], [0], [1], [0, 0, 1, 1], [], []>} : vector<5x5xf32>, vector<5x2xf32>, vector<5x2xf32> -> vector<5x2xf32>
    %277 = arith.addf %267, %276 : vector<5x2xf32>
    %278 = arith.mulf %275, %277 : vector<5x2xf32>
    %279 = vector.broadcast %271 : vector<1x2xf32> to vector<5x2xf32>
    %280 = arith.mulf %278, %279 : vector<5x2xf32>
    %281 = arith.addf %243, %280 : vector<5x2xf32>
    %282 = vector.broadcast %c6_i32 : i32 to vector<1x2xi32>
    %283 = arith.cmpi eq, %4, %282 : vector<1x2xi32>
    %284 = vector.broadcast %1 : vector<5x1xf32> to vector<5x2xf32>
    %285 = arith.mulf %275, %284 : vector<5x2xf32>
    %cst_70 = arith.constant 0.000000e+00 : f32
    %286 = vector.shape_cast %283 : vector<1x2xi1> to vector<1x2xi1>
    %287 = vector.broadcast %286 : vector<1x2xi1> to vector<5x2xi1>
    %288 = vector.broadcast %cst_70 : f32 to vector<5x2xf32>
    %289 = arith.select %287, %285, %288 : vector<5x2xi1>, vector<5x2xf32>
    %290 = arith.addf %281, %289 : vector<5x2xf32>
    %cst_71 = arith.constant dense<0.000000e+00> : vector<5x2xf32>
    %291 = tpu.matmul %3, %263, %cst_71 {dimension_numbers = #tpu.dot_dimension_numbers<[1], [0], [0], [1], [0, 0, 1, 1], [], []>} : vector<5x5xf32>, vector<5x2xf32>, vector<5x2xf32> -> vector<5x2xf32>
    %cst_72 = arith.constant dense<0xFF800000> : vector<2xf32>
    %292 = vector.multi_reduction <maximumf>, %267, %cst_72 [0] : vector<5x2xf32> to vector<2xf32>
    %293 = vector.shape_cast %292 : vector<2xf32> to vector<1x2xf32>
    %294 = vector.broadcast %293 : vector<1x2xf32> to vector<5x2xf32>
    %295 = arith.subf %267, %294 : vector<5x2xf32>
    %296 = math.exp %295 : vector<5x2xf32>
    %297 = arith.mulf %291, %296 : vector<5x2xf32>
    %cst_73 = arith.constant dense<0xFF800000> : vector<2xf32>
    %298 = vector.multi_reduction <maximumf>, %297, %cst_73 [0] : vector<5x2xf32> to vector<2xf32>
    %299 = vector.shape_cast %298 : vector<2xf32> to vector<1x2xf32>
    %300 = tpu.reciprocal %299 {approx = true} : vector<1x2xf32> -> vector<1x2xf32>
    %301 = vector.broadcast %300 : vector<1x2xf32> to vector<5x2xf32>
    %302 = arith.mulf %297, %301 : vector<5x2xf32>
    %303 = arith.addf %264, %293 : vector<1x2xf32>
    %304 = math.log %300 : vector<1x2xf32>
    %305 = arith.subf %303, %304 : vector<1x2xf32>
    %cst_74 = arith.constant 0.000000e+00 : f32
    %306 = vector.broadcast %cst_74 : f32 to vector<1x2xf32>
    %307 = arith.cmpf ogt, %271, %306 : vector<1x2xf32>
    %308 = vector.shape_cast %307 : vector<1x2xi1> to vector<1x2xi1>
    %309 = vector.broadcast %308 : vector<1x2xi1> to vector<5x2xi1>
    %310 = arith.select %309, %302, %263 : vector<5x2xi1>, vector<5x2xf32>
    %311 = arith.select %307, %305, %264 : vector<1x2xi1>, vector<1x2xf32>
    %c7_i32 = arith.constant 7 : i32
    %312 = arith.index_cast %c7_i32 : i32 to index
    %c0_75 = arith.constant 0 : index
    %c0_76 = arith.constant 0 : index
    %313 = vector.load %arg1[%312, %c0_75, %c0_76] : memref<8x5x2xf32, #tpu.memory_space<vmem>>, vector<1x5x2xf32>
    %314 = vector.shape_cast %313 : vector<1x5x2xf32> to vector<5x2xf32>
    %315 = arith.index_cast %c7_i32 : i32 to index
    %c0_77 = arith.constant 0 : index
    %316 = vector.load %arg2[%315, %c0_77] : memref<8x2xi32, #tpu.memory_space<vmem>>, vector<1x2xi32>
    %317 = arith.index_cast %c7_i32 : i32 to index
    %c0_78 = arith.constant 0 : index
    %318 = vector.load %arg3[%317, %c0_78] : memref<8x2xf32, #tpu.memory_space<vmem>>, vector<1x2xf32>
    %319 = vector.broadcast %316 : vector<1x2xi32> to vector<5x2xi32>
    %320 = arith.cmpi eq, %5, %319 : vector<5x2xi32>
    %321 = arith.extui %320 : vector<5x2xi1> to vector<5x2xi32>
    %322 = arith.sitofp %321 : vector<5x2xi32> to vector<5x2xf32>
    %cst_79 = arith.constant dense<0.000000e+00> : vector<5x2xf32>
    %323 = tpu.matmul %2, %275, %cst_79 {dimension_numbers = #tpu.dot_dimension_numbers<[1], [0], [0], [1], [0, 0, 1, 1], [], []>} : vector<5x5xf32>, vector<5x2xf32>, vector<5x2xf32> -> vector<5x2xf32>
    %324 = arith.addf %314, %323 : vector<5x2xf32>
    %325 = arith.mulf %322, %324 : vector<5x2xf32>
    %326 = vector.broadcast %318 : vector<1x2xf32> to vector<5x2xf32>
    %327 = arith.mulf %325, %326 : vector<5x2xf32>
    %328 = arith.addf %290, %327 : vector<5x2xf32>
    %329 = vector.broadcast %c7_i32 : i32 to vector<1x2xi32>
    %330 = arith.cmpi eq, %4, %329 : vector<1x2xi32>
    %331 = vector.broadcast %1 : vector<5x1xf32> to vector<5x2xf32>
    %332 = arith.mulf %322, %331 : vector<5x2xf32>
    %cst_80 = arith.constant 0.000000e+00 : f32
    %333 = vector.shape_cast %330 : vector<1x2xi1> to vector<1x2xi1>
    %334 = vector.broadcast %333 : vector<1x2xi1> to vector<5x2xi1>
    %335 = vector.broadcast %cst_80 : f32 to vector<5x2xf32>
    %336 = arith.select %334, %332, %335 : vector<5x2xi1>, vector<5x2xf32>
    %337 = arith.addf %328, %336 : vector<5x2xf32>
    %cst_81 = arith.constant dense<0.000000e+00> : vector<5x2xf32>
    %338 = tpu.matmul %3, %310, %cst_81 {dimension_numbers = #tpu.dot_dimension_numbers<[1], [0], [0], [1], [0, 0, 1, 1], [], []>} : vector<5x5xf32>, vector<5x2xf32>, vector<5x2xf32> -> vector<5x2xf32>
    %cst_82 = arith.constant dense<0xFF800000> : vector<2xf32>
    %339 = vector.multi_reduction <maximumf>, %314, %cst_82 [0] : vector<5x2xf32> to vector<2xf32>
    %340 = vector.shape_cast %339 : vector<2xf32> to vector<1x2xf32>
    %341 = vector.broadcast %340 : vector<1x2xf32> to vector<5x2xf32>
    %342 = arith.subf %314, %341 : vector<5x2xf32>
    %343 = math.exp %342 : vector<5x2xf32>
    %344 = arith.mulf %338, %343 : vector<5x2xf32>
    %cst_83 = arith.constant dense<0xFF800000> : vector<2xf32>
    %345 = vector.multi_reduction <maximumf>, %344, %cst_83 [0] : vector<5x2xf32> to vector<2xf32>
    %346 = vector.shape_cast %345 : vector<2xf32> to vector<1x2xf32>
    %347 = tpu.reciprocal %346 {approx = true} : vector<1x2xf32> -> vector<1x2xf32>
    %348 = vector.broadcast %347 : vector<1x2xf32> to vector<5x2xf32>
    %349 = arith.mulf %344, %348 : vector<5x2xf32>
    %350 = arith.addf %311, %340 : vector<1x2xf32>
    %351 = math.log %347 : vector<1x2xf32>
    %352 = arith.subf %350, %351 : vector<1x2xf32>
    %cst_84 = arith.constant 0.000000e+00 : f32
    %353 = vector.broadcast %cst_84 : f32 to vector<1x2xf32>
    %354 = arith.cmpf ogt, %318, %353 : vector<1x2xf32>
    %355 = vector.shape_cast %354 : vector<1x2xi1> to vector<1x2xi1>
    %356 = vector.broadcast %355 : vector<1x2xi1> to vector<5x2xi1>
    %357 = arith.select %356, %349, %310 : vector<5x2xi1>, vector<5x2xf32>
    %358 = arith.select %354, %352, %311 : vector<1x2xi1>, vector<1x2xf32>
    %c7_i32_85 = arith.constant 7 : i32
    %cst_86 = arith.constant dense<0.000000e+00> : vector<2xf32>
    %359 = vector.multi_reduction <add>, %337, %cst_86 [0] : vector<5x2xf32> to vector<2xf32>
    %360 = vector.shape_cast %359 : vector<2xf32> to vector<1x2xf32>
    %cst_87 = arith.constant dense<0xFF800000> : vector<1xf32>
    %361 = vector.multi_reduction <maximumf>, %1, %cst_87 [0] : vector<5x1xf32> to vector<1xf32>
    %362 = vector.shape_cast %361 : vector<1xf32> to vector<1x1xf32>
    %363 = vector.broadcast %362 : vector<1x1xf32> to vector<5x1xf32>
    %364 = arith.subf %1, %363 : vector<5x1xf32>
    %365 = math.exp %364 : vector<5x1xf32>
    %366 = vector.broadcast %365 : vector<5x1xf32> to vector<5x2xf32>
    %367 = arith.mulf %357, %366 : vector<5x2xf32>
    %cst_88 = arith.constant dense<0.000000e+00> : vector<2xf32>
    %368 = vector.multi_reduction <add>, %367, %cst_88 [0] : vector<5x2xf32> to vector<2xf32>
    %369 = vector.shape_cast %368 : vector<2xf32> to vector<1x2xf32>
    %370 = vector.broadcast %362 : vector<1x1xf32> to vector<1x2xf32>
    %371 = arith.addf %358, %370 : vector<1x2xf32>
    %372 = math.log %369 : vector<1x2xf32>
    %373 = arith.addf %371, %372 : vector<1x2xf32>
    %374 = arith.subf %360, %373 : vector<1x2xf32>
    %c0_89 = arith.constant 0 : index
    %c0_90 = arith.constant 0 : index
    %375 = vector.load %arg9[%c0_89, %c0_90] : memref<1x2xf32, #tpu.memory_space<vmem>>, vector<1x2xf32>
    tpu.vector_store %arg9[%c0_89, %c0_90], %374 {strides = array<i32>} : memref<1x2xf32, #tpu.memory_space<vmem>>, vector<1x2xf32>,
    return
  }
  func.func @transform_0(%arg0: i32) -> (i32, i32, i32) {
    %c0_i32 = arith.constant 0 : i32
    %c0_i32_0 = arith.constant 0 : i32
    %c0_i32_1 = arith.constant 0 : i32
    return %c0_i32, %c0_i32_0, %arg0 : i32, i32, i32
  }
  func.func @transform_1(%arg0: i32) -> (i32, i32) {
    %c0_i32 = arith.constant 0 : i32
    %c0_i32_0 = arith.constant 0 : i32
    return %c0_i32, %arg0 : i32, i32
  }
  func.func @transform_2(%arg0: i32) -> (i32, i32) {
    %c0_i32 = arith.constant 0 : i32
    %c0_i32_0 = arith.constant 0 : i32
    return %c0_i32, %arg0 : i32, i32
  }
  func.func @transform_3(%arg0: i32) -> (i32, i32) {
    %c0_i32 = arith.constant 0 : i32
    %c0_i32_0 = arith.constant 0 : i32
    return %c0_i32, %arg0 : i32, i32
  }
  func.func @transform_4(%arg0: i32) -> (i32, i32) {
    %c0_i32 = arith.constant 0 : i32
    %c0_i32_0 = arith.constant 0 : i32
    %c0_i32_1 = arith.constant 0 : i32
    return %c0_i32, %c0_i32_0 : i32, i32
  }
  func.func @transform_5(%arg0: i32) -> (i32, i32) {
    %c0_i32 = arith.constant 0 : i32
    %c0_i32_0 = arith.constant 0 : i32
    %c0_i32_1 = arith.constant 0 : i32
    return %c0_i32, %c0_i32_0 : i32, i32
  }
  func.func @transform_6(%arg0: i32) -> (i32, i32) {
    %c0_i32 = arith.constant 0 : i32
    %c0_i32_0 = arith.constant 0 : i32
    %c0_i32_1 = arith.constant 0 : i32
    return %c0_i32, %c0_i32_0 : i32, i32
  }
  func.func @transform_7(%arg0: i32) -> (i32, i32) {
    %c0_i32 = arith.constant 0 : i32
    %c0_i32_0 = arith.constant 0 : i32
    %c0_i32_1 = arith.constant 0 : i32
    return %c0_i32, %c0_i32_0 : i32, i32
  }
  func.func @transform_8(%arg0: i32) -> (i32, i32) {
    %c0_i32 = arith.constant 0 : i32
    %c0_i32_0 = arith.constant 0 : i32
    return %c0_i32, %arg0 : i32, i32
  }
}

</mosaic_0001>

<llo_original>
// kernel: tpu_custom_call.1
$region0: #{tpu_custom_call.1}
  #allocation0 [shape = 'u32[]', space=smem, size = 0x4, offset = 0x4, fixed_abs, tag = 'smem constant byte address 0x4 - core index']
  #allocation1 [shape = 'u32[72,128]{1,0:T(1,128)}', space=vmem, size = 0x9000, scoped, tag = 'internal scratch']
  %s0 = inlined_call_operand.vmem [shape: f32[8,5,2], index: 0, kind: input, shape index: {}]
  %s1 = inlined_call_operand.vmem [shape: s32[8,2], index: 1, kind: input, shape index: {}]
  %s2 = inlined_call_operand.vmem [shape: f32[8,2], index: 2, kind: input, shape index: {}]
  %s3 = inlined_call_operand.vmem [shape: s32[1,2], index: 3, kind: input, shape index: {}]
  %s4 = inlined_call_operand.vmem [shape: f32[5,1], index: 4, kind: input, shape index: {}]
  %s5 = inlined_call_operand.vmem [shape: f32[5,1], index: 5, kind: input, shape index: {}]
  %s6 = inlined_call_operand.vmem [shape: f32[5,5], index: 6, kind: input, shape index: {}]
  %s7 = inlined_call_operand.vmem [shape: f32[5,5], index: 7, kind: input, shape index: {}]
  %s8 = inlined_call_operand.hbm [shape: f32[1,2], index: 8, kind: output, shape index: {}]
  %s9 = sld [smem:[#allocation0]]
  $region42: #{tpu_custom_call.1} parent=0
    _
  %s11 = ssub.s32 1, %s9
  %s12 = scalar_select 0, %s11, %s9
  $region1: #{tpu_custom_call.1} parent=0
    #allocation2 [shape = 'u8[512]{0}', space=vmem, size = 0x400, scoped, tag = 'output window, operand 0, single buffered']
    #allocation3 [shape = 's32[1]{0}', space=sflag, size = 0x4, scoped, tag = 'scoped memory for tpu_custom_call.1']
    %13 = vsyncpa [#allocation3], 0
    // Predicated region
    $region2: #{tpu_custom_call.1} parent=1 // pred_check
      _
    $region3: #{tpu_custom_call.1} parent=1 // pred_check_branch
      %15 = sbr.rel (0) target = $region5
    $region4: #{tpu_custom_call.1} parent=1 // pred_region
      _
    $region5: #{tpu_custom_call.1} parent=1 // pred_fallthru
      _
    // Predicated region
    $region6: #{tpu_custom_call.1} parent=1 // pred_check
      _
    $region7: #{tpu_custom_call.1} parent=1 // pred_check_branch
      %17 = sbr.rel (0) target = $region9
    $region8: #{tpu_custom_call.1} parent=1 // pred_region
      _
    $region9: #{tpu_custom_call.1} parent=1 // pred_fallthru
      _
    // Predicated region
    $region10: #{tpu_custom_call.1} parent=1 // pred_check
      _
    $region11: #{tpu_custom_call.1} parent=1 // pred_check_branch
      %19 = sbr.rel (0) target = $region13
    $region12: #{tpu_custom_call.1} parent=1 // pred_region
      _
    $region13: #{tpu_custom_call.1} parent=1 // pred_fallthru
      _
    // Predicated region
    $region14: #{tpu_custom_call.1} parent=1 // pred_check
      _
    $region15: #{tpu_custom_call.1} parent=1 // pred_check_branch
      %21 = sbr.rel (0) target = $region17
    $region16: #{tpu_custom_call.1} parent=1 // pred_region
      _
    $region17: #{tpu_custom_call.1} parent=1 // pred_fallthru
      _
    // Predicated region
    $region18: #{tpu_custom_call.1} parent=1 // pred_check
      _
    $region19: #{tpu_custom_call.1} parent=1 // pred_check_branch
      %23 = sbr.rel (0) target = $region21
    $region20: #{tpu_custom_call.1} parent=1 // pred_region
      _
    $region21: #{tpu_custom_call.1} parent=1 // pred_fallthru
      _
    // Predicated region
    $region22: #{tpu_custom_call.1} parent=1 // pred_check
      _
    $region23: #{tpu_custom_call.1} parent=1 // pred_check_branch
      %25 = sbr.rel (0) target = $region25
    $region24: #{tpu_custom_call.1} parent=1 // pred_region
      _
    $region25: #{tpu_custom_call.1} parent=1 // pred_fallthru
      _
    // Predicated region
    $region26: #{tpu_custom_call.1} parent=1 // pred_check
      _
    $region27: #{tpu_custom_call.1} parent=1 // pred_check_branch
      %27 = sbr.rel (0) target = $region29
    $region28: #{tpu_custom_call.1} parent=1 // pred_region
      _
    $region29: #{tpu_custom_call.1} parent=1 // pred_fallthru
      _
    // Predicated region
    $region30: #{tpu_custom_call.1} parent=1 // pred_check
      _
    $region31: #{tpu_custom_call.1} parent=1 // pred_check_branch
      %29 = sbr.rel (0) target = $region33
    $region32: #{tpu_custom_call.1} parent=1 // pred_region
      _
    $region33: #{tpu_custom_call.1} parent=1 // pred_fallthru
      _
    %v30 = vld [vmem:[%s4] sm:$0x1f]
    %v31 = vld [vmem:[%s5] sm:$0x1f]
    %v32 = vld [vmem:[%s6] sm:$0x1f]
    %v33 = vld [vmem:[%s7] sm:$0x1f]
    %v34 = vld [vmem:[%s3] sm:$0x1]
    %v35 = vlaneseq
    %v36 = vshrl.u32 %v35, 7
    %v37 = vld [vmem:[%s0] sm:$0x1f]
    %v38 = vld [vmem:[%s1] sm:$0x1]
    %v39 = vperm.slane %v38, 0
    %vm40 = vcmp.eq.s32.totalorder %v36, %v39
    %v41 = vsel %vm40, 1, 0
    %v42 = vcvt.s32.f32 %v41
    %44 = vset.pattern.permute.xlu0 0
    %45 = vperm.xlu0 %44, %v30
    %v46 = vpop.permute.xlu0 %45
    %v48 = vadd.f32 %v46, %v37
    %v49 = vmul.f32 %v42, %v48
    %vm50 = vcmp.eq.s32.totalorder %v34, 0
    %52 = vset.pattern.permute.xlu0 0
    %53 = vperm.xlu0 %52, %v31
    %v54 = vpop.permute.xlu0 %53
    %v56 = vmul.f32 %v42, %v54
    %v57 = vsel %vm50, 1, 0
    %v58 = vperm.slane %v57, 0
    %vm59 = vcmp.eq.s32.totalorder %v58, 1
    %v60 = vsel %vm59, %v56, 0.0
    %v61 = vadd.f32 %v49, %v60
    %vm62 = vcmask 12288
    %v63 = vsel %vm62, %v48, -inf
    %v64 = vrot.slane %v63, 4
    %v65 = vmax.f32 %v63, %v64
    %v66 = vrot.slane %v65, 2
    %v67 = vmax.f32 %v65, %v66
    %v68 = vrot.slane %v67, 1
    %v69 = vmax.f32 %v67, %v68
    %v70 = vsub.f32 %v48, %v69
    %v71 = vmul.f32 %v70, 1.442695
    %v72 = vpow.pop %v71
    %s73 = scalar_lea.vmem %s0, 8
    %v74 = vld [vmem:[%s73] sm:$0x1f]
    %v75 = vld [vmem:[%s1 + $0x1] sm:$0x1]
    %v76 = vld [vmem:[%s2 + $0x1] sm:$0x1]
    %v77 = vperm.slane %v75, 0
    %vm78 = vcmp.eq.s32.totalorder %v36, %v77
    %v79 = vsel %vm78, 1, 0
    %v80 = vcvt.s32.f32 %v79
    %vm81 = vcmask 39936
    %v83 = vsel %vm81, %v32, 0
    %vm85 = vcmask 1044480
    %v87 = vsel %vm85, %v42, 0
    %89 = vmatpush.msra.mxu0 0.0
    %90 = vmatpush.msra.mxu0 0.0
    %91 = vmatpush.msra.mxu0 0.0
    %92 = vmatpush.msra.mxu0 0.0
    %93 = vmatpush.msra.mxu0 0.0
    %94 = vmatpush.msra.mxu0 0.0
    %95 = vmatpush.msra.mxu0 0.0
    %96 = vmatpush.msra.mxu0 0.0
    %97 = vmatpush.msra.mxu0 0.0
    %98 = vmatpush.msra.mxu0 0.0
    %99 = vmatpush.msra.mxu0 0.0
    %100 = vmatpush.msra.mxu0 0.0
    %101 = vmatpush.msra.mxu0 0.0
    %102 = vmatpush.msra.mxu0 0.0
    %103 = vmatpush.msra.mxu0 0.0
    %104 = vmatpush.msra.mxu0 %v87
    %105 = vmatmul.f32.gmra.mxu0 %v83
    %v106 = vpop.f32.mrf.mxu0
    %v107 = vadd.f32 0.0, %v106
    %108 = vdwg.mxu0
    %v109 = vadd.f32 %v74, %v107
    %v110 = vmul.f32 %v80, %v109
    %v111 = vperm.slane %v76, 0
    %v112 = vmul.f32 %v110, %v111
    %v113 = vadd.f32 %v61, %v112
    %vm114 = vcmp.eq.s32.totalorder %v34, 1
    %v115 = vmul.f32 %v80, %v54
    %v116 = vsel %vm114, 1, 0
    %v117 = vperm.slane %v116, 0
    %vm118 = vcmp.eq.s32.totalorder %v117, 1
    %v119 = vsel %vm118, %v115, 0.0
    %v120 = vadd.f32 %v113, %v119
    %v122 = vsel %vm81, %v33, 0
    %v125 = vsel %vm85, %v72, 0
    %127 = vmatpush.msra.mxu0 0.0
    %128 = vmatpush.msra.mxu0 0.0
    %129 = vmatpush.msra.mxu0 0.0
    %130 = vmatpush.msra.mxu0 0.0
    %131 = vmatpush.msra.mxu0 0.0
    %132 = vmatpush.msra.mxu0 0.0
    %133 = vmatpush.msra.mxu0 0.0
    %134 = vmatpush.msra.mxu0 0.0
    %135 = vmatpush.msra.mxu0 0.0
    %136 = vmatpush.msra.mxu0 0.0
    %137 = vmatpush.msra.mxu0 0.0
    %138 = vmatpush.msra.mxu0 0.0
    %139 = vmatpush.msra.mxu0 0.0
    %140 = vmatpush.msra.mxu0 0.0
    %141 = vmatpush.msra.mxu0 0.0
    %142 = vmatpush.msra.mxu0 %v125
    %143 = vmatmul.f32.gmra.mxu0 %v122
    %v144 = vpop.f32.mrf.mxu0
    %v145 = vadd.f32 0.0, %v144
    %146 = vdwg.mxu0
    %v147 = vsel %vm62, %v74, -inf
    %v148 = vrot.slane %v147, 4
    %v149 = vmax.f32 %v147, %v148
    %v150 = vrot.slane %v149, 2
    %v151 = vmax.f32 %v149, %v150
    %v152 = vrot.slane %v151, 1
    %v153 = vmax.f32 %v151, %v152
    %v154 = vsub.f32 %v74, %v153
    %v155 = vmul.f32 %v154, 1.442695
    %v156 = vpow.pop %v155
    %v157 = vmul.f32 %v145, %v156
    %v158 = vsel %vm62, %v157, -inf
    %v159 = vrot.slane %v158, 4
    %v160 = vmax.f32 %v158, %v159
    %v161 = vrot.slane %v160, 2
    %v162 = vmax.f32 %v160, %v161
    %v163 = vrot.slane %v162, 1
    %v164 = vmax.f32 %v162, %v163
    %v165 = vrcp.pop %v164
    %v166 = vmul.f32 %v157, %v165
    %v167 = vadd.f32 %v69, %v153
    %v168 = vlog2.pop %v165
    %v169 = vmul.f32 %v168, 0.6931472
    %v170 = vsub.f32 %v167, %v169
    %vm171 = vcmp.gt.f32.partialorder %v76, 0.0
    %v172 = vsel %vm171, 1, 0
    %v173 = vperm.slane %v172, 0
    %vm174 = vcmp.eq.s32.totalorder %v173, 1
    %v175 = vsel %vm174, %v166, %v72
    %v176 = vsel %vm171, %v170, %v69
    %s177 = scalar_lea.vmem %s0, 16
    %v178 = vld [vmem:[%s177] sm:$0x1f]
    %v179 = vld [vmem:[%s1 + $0x2] sm:$0x1]
    %v180 = vld [vmem:[%s2 + $0x2] sm:$0x1]
    %v181 = vperm.slane %v179, 0
    %vm182 = vcmp.eq.s32.totalorder %v36, %v181
    %v183 = vsel %vm182, 1, 0
    %v184 = vcvt.s32.f32 %v183
    %v186 = vsel %vm85, %v80, 0
    %188 = vmatpush.msra.mxu0 0.0
    %189 = vmatpush.msra.mxu0 0.0
    %190 = vmatpush.msra.mxu0 0.0
    %191 = vmatpush.msra.mxu0 0.0
    %192 = vmatpush.msra.mxu0 0.0
    %193 = vmatpush.msra.mxu0 0.0
    %194 = vmatpush.msra.mxu0 0.0
    %195 = vmatpush.msra.mxu0 0.0
    %196 = vmatpush.msra.mxu0 0.0
    %197 = vmatpush.msra.mxu0 0.0
    %198 = vmatpush.msra.mxu0 0.0
    %199 = vmatpush.msra.mxu0 0.0
    %200 = vmatpush.msra.mxu0 0.0
    %201 = vmatpush.msra.mxu0 0.0
    %202 = vmatpush.msra.mxu0 0.0
    %203 = vmatpush.msra.mxu0 %v186
    %204 = vmatmul.f32.gmra.mxu0 %v83
    %v205 = vpop.f32.mrf.mxu0
    %v206 = vadd.f32 0.0, %v205
    %207 = vdwg.mxu0
    %v208 = vadd.f32 %v178, %v206
    %v209 = vmul.f32 %v184, %v208
    %v210 = vperm.slane %v180, 0
    %v211 = vmul.f32 %v209, %v210
    %v212 = vadd.f32 %v120, %v211
    %vm213 = vcmp.eq.s32.totalorder %v34, 2
    %v214 = vmul.f32 %v184, %v54
    %v215 = vsel %vm213, 1, 0
    %v216 = vperm.slane %v215, 0
    %vm217 = vcmp.eq.s32.totalorder %v216, 1
    %v218 = vsel %vm217, %v214, 0.0
    %v219 = vadd.f32 %v212, %v218
    %v221 = vsel %vm85, %v175, 0
    %223 = vmatpush.msra.mxu0 0.0
    %224 = vmatpush.msra.mxu0 0.0
    %225 = vmatpush.msra.mxu0 0.0
    %226 = vmatpush.msra.mxu0 0.0
    %227 = vmatpush.msra.mxu0 0.0
    %228 = vmatpush.msra.mxu0 0.0
    %229 = vmatpush.msra.mxu0 0.0
    %230 = vmatpush.msra.mxu0 0.0
    %231 = vmatpush.msra.mxu0 0.0
    %232 = vmatpush.msra.mxu0 0.0
    %233 = vmatpush.msra.mxu0 0.0
    %234 = vmatpush.msra.mxu0 0.0
    %235 = vmatpush.msra.mxu0 0.0
    %236 = vmatpush.msra.mxu0 0.0
    %237 = vmatpush.msra.mxu0 0.0
    %238 = vmatpush.msra.mxu0 %v221
    %239 = vmatmul.f32.gmra.mxu0 %v122
    %v240 = vpop.f32.mrf.mxu0
    %v241 = vadd.f32 0.0, %v240
    %242 = vdwg.mxu0
    %v243 = vsel %vm62, %v178, -inf
    %v244 = vrot.slane %v243, 4
    %v245 = vmax.f32 %v243, %v244
    %v246 = vrot.slane %v245, 2
    %v247 = vmax.f32 %v245, %v246
    %v248 = vrot.slane %v247, 1
    %v249 = vmax.f32 %v247, %v248
    %v250 = vsub.f32 %v178, %v249
    %v251 = vmul.f32 %v250, 1.442695
    %v252 = vpow.pop %v251
    %v253 = vmul.f32 %v241, %v252
    %v254 = vsel %vm62, %v253, -inf
    %v255 = vrot.slane %v254, 4
    %v256 = vmax.f32 %v254, %v255
    %v257 = vrot.slane %v256, 2
    %v258 = vmax.f32 %v256, %v257
    %v259 = vrot.slane %v258, 1
    %v260 = vmax.f32 %v258, %v259
    %v261 = vrcp.pop %v260
    %v262 = vmul.f32 %v253, %v261
    %v263 = vadd.f32 %v176, %v249
    %v264 = vlog2.pop %v261
    %v265 = vmul.f32 %v264, 0.6931472
    %v266 = vsub.f32 %v263, %v265
    %vm267 = vcmp.gt.f32.partialorder %v180, 0.0
    %v268 = vsel %vm267, 1, 0
    %v269 = vperm.slane %v268, 0
    %vm270 = vcmp.eq.s32.totalorder %v269, 1
    %v271 = vsel %vm270, %v262, %v175
    %v272 = vsel %vm267, %v266, %v176
    %s273 = scalar_lea.vmem %s0, 24
    %v274 = vld [vmem:[%s273] sm:$0x1f]
    %v275 = vld [vmem:[%s1 + $0x3] sm:$0x1]
    %v276 = vld [vmem:[%s2 + $0x3] sm:$0x1]
    %v277 = vperm.slane %v275, 0
    %vm278 = vcmp.eq.s32.totalorder %v36, %v277
    %v279 = vsel %vm278, 1, 0
    %v280 = vcvt.s32.f32 %v279
    %v282 = vsel %vm85, %v184, 0
    %284 = vmatpush.msra.mxu0 0.0
    %285 = vmatpush.msra.mxu0 0.0
    %286 = vmatpush.msra.mxu0 0.0
    %287 = vmatpush.msra.mxu0 0.0
    %288 = vmatpush.msra.mxu0 0.0
    %289 = vmatpush.msra.mxu0 0.0
    %290 = vmatpush.msra.mxu0 0.0
    %291 = vmatpush.msra.mxu0 0.0
    %292 = vmatpush.msra.mxu0 0.0
    %293 = vmatpush.msra.mxu0 0.0
    %294 = vmatpush.msra.mxu0 0.0
    %295 = vmatpush.msra.mxu0 0.0
    %296 = vmatpush.msra.mxu0 0.0
    %297 = vmatpush.msra.mxu0 0.0
    %298 = vmatpush.msra.mxu0 0.0
    %299 = vmatpush.msra.mxu0 %v282
    %300 = vmatmul.f32.gmra.mxu0 %v83
    %v301 = vpop.f32.mrf.mxu0
    %v302 = vadd.f32 0.0, %v301
    %303 = vdwg.mxu0
    %v304 = vadd.f32 %v274, %v302
    %v305 = vmul.f32 %v280, %v304
    %v306 = vperm.slane %v276, 0
    %v307 = vmul.f32 %v305, %v306
    %v308 = vadd.f32 %v219, %v307
    %vm309 = vcmp.eq.s32.totalorder %v34, 3
    %v310 = vmul.f32 %v280, %v54
    %v311 = vsel %vm309, 1, 0
    %v312 = vperm.slane %v311, 0
    %vm313 = vcmp.eq.s32.totalorder %v312, 1
    %v314 = vsel %vm313, %v310, 0.0
    %v315 = vadd.f32 %v308, %v314
    %v317 = vsel %vm85, %v271, 0
    %319 = vmatpush.msra.mxu0 0.0
    %320 = vmatpush.msra.mxu0 0.0
    %321 = vmatpush.msra.mxu0 0.0
    %322 = vmatpush.msra.mxu0 0.0
    %323 = vmatpush.msra.mxu0 0.0
    %324 = vmatpush.msra.mxu0 0.0
    %325 = vmatpush.msra.mxu0 0.0
    %326 = vmatpush.msra.mxu0 0.0
    %327 = vmatpush.msra.mxu0 0.0
    %328 = vmatpush.msra.mxu0 0.0
    %329 = vmatpush.msra.mxu0 0.0
    %330 = vmatpush.msra.mxu0 0.0
    %331 = vmatpush.msra.mxu0 0.0
    %332 = vmatpush.msra.mxu0 0.0
    %333 = vmatpush.msra.mxu0 0.0
    %334 = vmatpush.msra.mxu0 %v317
    %335 = vmatmul.f32.gmra.mxu0 %v122
    %v336 = vpop.f32.mrf.mxu0
    %v337 = vadd.f32 0.0, %v336
    %338 = vdwg.mxu0
    %v339 = vsel %vm62, %v274, -inf
    %v340 = vrot.slane %v339, 4
    %v341 = vmax.f32 %v339, %v340
    %v342 = vrot.slane %v341, 2
    %v343 = vmax.f32 %v341, %v342
    %v344 = vrot.slane %v343, 1
    %v345 = vmax.f32 %v343, %v344
    %v346 = vsub.f32 %v274, %v345
    %v347 = vmul.f32 %v346, 1.442695
    %v348 = vpow.pop %v347
    %v349 = vmul.f32 %v337, %v348
    %v350 = vsel %vm62, %v349, -inf
    %v351 = vrot.slane %v350, 4
    %v352 = vmax.f32 %v350, %v351
    %v353 = vrot.slane %v352, 2
    %v354 = vmax.f32 %v352, %v353
    %v355 = vrot.slane %v354, 1
    %v356 = vmax.f32 %v354, %v355
    %v357 = vrcp.pop %v356
    %v358 = vmul.f32 %v349, %v357
    %v359 = vadd.f32 %v272, %v345
    %v360 = vlog2.pop %v357
    %v361 = vmul.f32 %v360, 0.6931472
    %v362 = vsub.f32 %v359, %v361
    %vm363 = vcmp.gt.f32.partialorder %v276, 0.0
    %v364 = vsel %vm363, 1, 0
    %v365 = vperm.slane %v364, 0
    %vm366 = vcmp.eq.s32.totalorder %v365, 1
    %v367 = vsel %vm366, %v358, %v271
    %v368 = vsel %vm363, %v362, %v272
    %s369 = scalar_lea.vmem %s0, 32
    %v370 = vld [vmem:[%s369] sm:$0x1f]
    %v371 = vld [vmem:[%s1 + $0x4] sm:$0x1]
    %v372 = vld [vmem:[%s2 + $0x4] sm:$0x1]
    %v373 = vperm.slane %v371, 0
    %vm374 = vcmp.eq.s32.totalorder %v36, %v373
    %v375 = vsel %vm374, 1, 0
    %v376 = vcvt.s32.f32 %v375
    %v378 = vsel %vm85, %v280, 0
    %380 = vmatpush.msra.mxu0 0.0
    %381 = vmatpush.msra.mxu0 0.0
    %382 = vmatpush.msra.mxu0 0.0
    %383 = vmatpush.msra.mxu0 0.0
    %384 = vmatpush.msra.mxu0 0.0
    %385 = vmatpush.msra.mxu0 0.0
    %386 = vmatpush.msra.mxu0 0.0
    %387 = vmatpush.msra.mxu0 0.0
    %388 = vmatpush.msra.mxu0 0.0
    %389 = vmatpush.msra.mxu0 0.0
    %390 = vmatpush.msra.mxu0 0.0
    %391 = vmatpush.msra.mxu0 0.0
    %392 = vmatpush.msra.mxu0 0.0
    %393 = vmatpush.msra.mxu0 0.0
    %394 = vmatpush.msra.mxu0 0.0
    %395 = vmatpush.msra.mxu0 %v378
    %396 = vmatmul.f32.gmra.mxu0 %v83
    %v397 = vpop.f32.mrf.mxu0
    %v398 = vadd.f32 0.0, %v397
    %399 = vdwg.mxu0
    %v400 = vadd.f32 %v370, %v398
    %v401 = vmul.f32 %v376, %v400
    %v402 = vperm.slane %v372, 0
    %v403 = vmul.f32 %v401, %v402
    %v404 = vadd.f32 %v315, %v403
    %vm405 = vcmp.eq.s32.totalorder %v34, 4
    %v406 = vmul.f32 %v376, %v54
    %v407 = vsel %vm405, 1, 0
    %v408 = vperm.slane %v407, 0
    %vm409 = vcmp.eq.s32.totalorder %v408, 1
    %v410 = vsel %vm409, %v406, 0.0
    %v411 = vadd.f32 %v404, %v410
    %v413 = vsel %vm85, %v367, 0
    %415 = vmatpush.msra.mxu0 0.0
    %416 = vmatpush.msra.mxu0 0.0
    %417 = vmatpush.msra.mxu0 0.0
    %418 = vmatpush.msra.mxu0 0.0
    %419 = vmatpush.msra.mxu0 0.0
    %420 = vmatpush.msra.mxu0 0.0
    %421 = vmatpush.msra.mxu0 0.0
    %422 = vmatpush.msra.mxu0 0.0
    %423 = vmatpush.msra.mxu0 0.0
    %424 = vmatpush.msra.mxu0 0.0
    %425 = vmatpush.msra.mxu0 0.0
    %426 = vmatpush.msra.mxu0 0.0
    %427 = vmatpush.msra.mxu0 0.0
    %428 = vmatpush.msra.mxu0 0.0
    %429 = vmatpush.msra.mxu0 0.0
    %430 = vmatpush.msra.mxu0 %v413
    %431 = vmatmul.f32.gmra.mxu0 %v122
    %v432 = vpop.f32.mrf.mxu0
    %v433 = vadd.f32 0.0, %v432
    %434 = vdwg.mxu0
    %v435 = vsel %vm62, %v370, -inf
    %v436 = vrot.slane %v435, 4
    %v437 = vmax.f32 %v435, %v436
    %v438 = vrot.slane %v437, 2
    %v439 = vmax.f32 %v437, %v438
    %v440 = vrot.slane %v439, 1
    %v441 = vmax.f32 %v439, %v440
    %v442 = vsub.f32 %v370, %v441
    %v443 = vmul.f32 %v442, 1.442695
    %v444 = vpow.pop %v443
    %v445 = vmul.f32 %v433, %v444
    %v446 = vsel %vm62, %v445, -inf
    %v447 = vrot.slane %v446, 4
    %v448 = vmax.f32 %v446, %v447
    %v449 = vrot.slane %v448, 2
    %v450 = vmax.f32 %v448, %v449
    %v451 = vrot.slane %v450, 1
    %v452 = vmax.f32 %v450, %v451
    %v453 = vrcp.pop %v452
    %v454 = vmul.f32 %v445, %v453
    %v455 = vadd.f32 %v368, %v441
    %v456 = vlog2.pop %v453
    %v457 = vmul.f32 %v456, 0.6931472
    %v458 = vsub.f32 %v455, %v457
    %vm459 = vcmp.gt.f32.partialorder %v372, 0.0
    %v460 = vsel %vm459, 1, 0
    %v461 = vperm.slane %v460, 0
    %vm462 = vcmp.eq.s32.totalorder %v461, 1
    %v463 = vsel %vm462, %v454, %v367
    %v464 = vsel %vm459, %v458, %v368
    %s465 = scalar_lea.vmem %s0, 40
    %v466 = vld [vmem:[%s465] sm:$0x1f]
    %v467 = vld [vmem:[%s1 + $0x5] sm:$0x1]
    %v468 = vld [vmem:[%s2 + $0x5] sm:$0x1]
    %v469 = vperm.slane %v467, 0
    %vm470 = vcmp.eq.s32.totalorder %v36, %v469
    %v471 = vsel %vm470, 1, 0
    %v472 = vcvt.s32.f32 %v471
    %v474 = vsel %vm85, %v376, 0
    %476 = vmatpush.msra.mxu0 0.0
    %477 = vmatpush.msra.mxu0 0.0
    %478 = vmatpush.msra.mxu0 0.0
    %479 = vmatpush.msra.mxu0 0.0
    %480 = vmatpush.msra.mxu0 0.0
    %481 = vmatpush.msra.mxu0 0.0
    %482 = vmatpush.msra.mxu0 0.0
    %483 = vmatpush.msra.mxu0 0.0
    %484 = vmatpush.msra.mxu0 0.0
    %485 = vmatpush.msra.mxu0 0.0
    %486 = vmatpush.msra.mxu0 0.0
    %487 = vmatpush.msra.mxu0 0.0
    %488 = vmatpush.msra.mxu0 0.0
    %489 = vmatpush.msra.mxu0 0.0
    %490 = vmatpush.msra.mxu0 0.0
    %491 = vmatpush.msra.mxu0 %v474
    %492 = vmatmul.f32.gmra.mxu0 %v83
    %v493 = vpop.f32.mrf.mxu0
    %v494 = vadd.f32 0.0, %v493
    %495 = vdwg.mxu0
    %v496 = vadd.f32 %v466, %v494
    %v497 = vmul.f32 %v472, %v496
    %v498 = vperm.slane %v468, 0
    %v499 = vmul.f32 %v497, %v498
    %v500 = vadd.f32 %v411, %v499
    %vm501 = vcmp.eq.s32.totalorder %v34, 5
    %v502 = vmul.f32 %v472, %v54
    %v503 = vsel %vm501, 1, 0
    %v504 = vperm.slane %v503, 0
    %vm505 = vcmp.eq.s32.totalorder %v504, 1
    %v506 = vsel %vm505, %v502, 0.0
    %v507 = vadd.f32 %v500, %v506
    %v509 = vsel %vm85, %v463, 0
    %511 = vmatpush.msra.mxu0 0.0
    %512 = vmatpush.msra.mxu0 0.0
    %513 = vmatpush.msra.mxu0 0.0
    %514 = vmatpush.msra.mxu0 0.0
    %515 = vmatpush.msra.mxu0 0.0
    %516 = vmatpush.msra.mxu0 0.0
    %517 = vmatpush.msra.mxu0 0.0
    %518 = vmatpush.msra.mxu0 0.0
    %519 = vmatpush.msra.mxu0 0.0
    %520 = vmatpush.msra.mxu0 0.0
    %521 = vmatpush.msra.mxu0 0.0
    %522 = vmatpush.msra.mxu0 0.0
    %523 = vmatpush.msra.mxu0 0.0
    %524 = vmatpush.msra.mxu0 0.0
    %525 = vmatpush.msra.mxu0 0.0
    %526 = vmatpush.msra.mxu0 %v509
    %527 = vmatmul.f32.gmra.mxu0 %v122
    %v528 = vpop.f32.mrf.mxu0
    %v529 = vadd.f32 0.0, %v528
    %530 = vdwg.mxu0
    %v531 = vsel %vm62, %v466, -inf
    %v532 = vrot.slane %v531, 4
    %v533 = vmax.f32 %v531, %v532
    %v534 = vrot.slane %v533, 2
    %v535 = vmax.f32 %v533, %v534
    %v536 = vrot.slane %v535, 1
    %v537 = vmax.f32 %v535, %v536
    %v538 = vsub.f32 %v466, %v537
    %v539 = vmul.f32 %v538, 1.442695
    %v540 = vpow.pop %v539
    %v541 = vmul.f32 %v529, %v540
    %v542 = vsel %vm62, %v541, -inf
    %v543 = vrot.slane %v542, 4
    %v544 = vmax.f32 %v542, %v543
    %v545 = vrot.slane %v544, 2
    %v546 = vmax.f32 %v544, %v545
    %v547 = vrot.slane %v546, 1
    %v548 = vmax.f32 %v546, %v547
    %v549 = vrcp.pop %v548
    %v550 = vmul.f32 %v541, %v549
    %v551 = vadd.f32 %v464, %v537
    %v552 = vlog2.pop %v549
    %v553 = vmul.f32 %v552, 0.6931472
    %v554 = vsub.f32 %v551, %v553
    %vm555 = vcmp.gt.f32.partialorder %v468, 0.0
    %v556 = vsel %vm555, 1, 0
    %v557 = vperm.slane %v556, 0
    %vm558 = vcmp.eq.s32.totalorder %v557, 1
    %v559 = vsel %vm558, %v550, %v463
    %v560 = vsel %vm555, %v554, %v464
    %s561 = scalar_lea.vmem %s0, 48
    %v562 = vld [vmem:[%s561] sm:$0x1f]
    %v563 = vld [vmem:[%s1 + $0x6] sm:$0x1]
    %v564 = vld [vmem:[%s2 + $0x6] sm:$0x1]
    %v565 = vperm.slane %v563, 0
    %vm566 = vcmp.eq.s32.totalorder %v36, %v565
    %v567 = vsel %vm566, 1, 0
    %v568 = vcvt.s32.f32 %v567
    %v570 = vsel %vm85, %v472, 0
    %572 = vmatpush.msra.mxu0 0.0
    %573 = vmatpush.msra.mxu0 0.0
    %574 = vmatpush.msra.mxu0 0.0
    %575 = vmatpush.msra.mxu0 0.0
    %576 = vmatpush.msra.mxu0 0.0
    %577 = vmatpush.msra.mxu0 0.0
    %578 = vmatpush.msra.mxu0 0.0
    %579 = vmatpush.msra.mxu0 0.0
    %580 = vmatpush.msra.mxu0 0.0
    %581 = vmatpush.msra.mxu0 0.0
    %582 = vmatpush.msra.mxu0 0.0
    %583 = vmatpush.msra.mxu0 0.0
    %584 = vmatpush.msra.mxu0 0.0
    %585 = vmatpush.msra.mxu0 0.0
    %586 = vmatpush.msra.mxu0 0.0
    %587 = vmatpush.msra.mxu0 %v570
    %588 = vmatmul.f32.gmra.mxu0 %v83
    %v589 = vpop.f32.mrf.mxu0
    %v590 = vadd.f32 0.0, %v589
    %591 = vdwg.mxu0
    %v592 = vadd.f32 %v562, %v590
    %v593 = vmul.f32 %v568, %v592
    %v594 = vperm.slane %v564, 0
    %v595 = vmul.f32 %v593, %v594
    %v596 = vadd.f32 %v507, %v595
    %vm597 = vcmp.eq.s32.totalorder %v34, 6
    %v598 = vmul.f32 %v568, %v54
    %v599 = vsel %vm597, 1, 0
    %v600 = vperm.slane %v599, 0
    %vm601 = vcmp.eq.s32.totalorder %v600, 1
    %v602 = vsel %vm601, %v598, 0.0
    %v603 = vadd.f32 %v596, %v602
    %v605 = vsel %vm85, %v559, 0
    %607 = vmatpush.msra.mxu0 0.0
    %608 = vmatpush.msra.mxu0 0.0
    %609 = vmatpush.msra.mxu0 0.0
    %610 = vmatpush.msra.mxu0 0.0
    %611 = vmatpush.msra.mxu0 0.0
    %612 = vmatpush.msra.mxu0 0.0
    %613 = vmatpush.msra.mxu0 0.0
    %614 = vmatpush.msra.mxu0 0.0
    %615 = vmatpush.msra.mxu0 0.0
    %616 = vmatpush.msra.mxu0 0.0
    %617 = vmatpush.msra.mxu0 0.0
    %618 = vmatpush.msra.mxu0 0.0
    %619 = vmatpush.msra.mxu0 0.0
    %620 = vmatpush.msra.mxu0 0.0
    %621 = vmatpush.msra.mxu0 0.0
    %622 = vmatpush.msra.mxu0 %v605
    %623 = vmatmul.f32.gmra.mxu0 %v122
    %v624 = vpop.f32.mrf.mxu0
    %v625 = vadd.f32 0.0, %v624
    %626 = vdwg.mxu0
    %v627 = vsel %vm62, %v562, -inf
    %v628 = vrot.slane %v627, 4
    %v629 = vmax.f32 %v627, %v628
    %v630 = vrot.slane %v629, 2
    %v631 = vmax.f32 %v629, %v630
    %v632 = vrot.slane %v631, 1
    %v633 = vmax.f32 %v631, %v632
    %v634 = vsub.f32 %v562, %v633
    %v635 = vmul.f32 %v634, 1.442695
    %v636 = vpow.pop %v635
    %v637 = vmul.f32 %v625, %v636
    %v638 = vsel %vm62, %v637, -inf
    %v639 = vrot.slane %v638, 4
    %v640 = vmax.f32 %v638, %v639
    %v641 = vrot.slane %v640, 2
    %v642 = vmax.f32 %v640, %v641
    %v643 = vrot.slane %v642, 1
    %v644 = vmax.f32 %v642, %v643
    %v645 = vrcp.pop %v644
    %v646 = vmul.f32 %v637, %v645
    %v647 = vadd.f32 %v560, %v633
    %v648 = vlog2.pop %v645
    %v649 = vmul.f32 %v648, 0.6931472
    %v650 = vsub.f32 %v647, %v649
    %vm651 = vcmp.gt.f32.partialorder %v564, 0.0
    %v652 = vsel %vm651, 1, 0
    %v653 = vperm.slane %v652, 0
    %vm654 = vcmp.eq.s32.totalorder %v653, 1
    %v655 = vsel %vm654, %v646, %v559
    %v656 = vsel %vm651, %v650, %v560
    %s657 = scalar_lea.vmem %s0, 56
    %v658 = vld [vmem:[%s657] sm:$0x1f]
    %v659 = vld [vmem:[%s1 + $0x7] sm:$0x1]
    %v660 = vld [vmem:[%s2 + $0x7] sm:$0x1]
    %v661 = vperm.slane %v659, 0
    %vm662 = vcmp.eq.s32.totalorder %v36, %v661
    %v663 = vsel %vm662, 1, 0
    %v664 = vcvt.s32.f32 %v663
    %v666 = vsel %vm85, %v568, 0
    %668 = vmatpush.msra.mxu0 0.0
    %669 = vmatpush.msra.mxu0 0.0
    %670 = vmatpush.msra.mxu0 0.0
    %671 = vmatpush.msra.mxu0 0.0
    %672 = vmatpush.msra.mxu0 0.0
    %673 = vmatpush.msra.mxu0 0.0
    %674 = vmatpush.msra.mxu0 0.0
    %675 = vmatpush.msra.mxu0 0.0
    %676 = vmatpush.msra.mxu0 0.0
    %677 = vmatpush.msra.mxu0 0.0
    %678 = vmatpush.msra.mxu0 0.0
    %679 = vmatpush.msra.mxu0 0.0
    %680 = vmatpush.msra.mxu0 0.0
    %681 = vmatpush.msra.mxu0 0.0
    %682 = vmatpush.msra.mxu0 0.0
    %683 = vmatpush.msra.mxu0 %v666
    %684 = vmatmul.f32.gmra.mxu0 %v83
    %v685 = vpop.f32.mrf.mxu0
    %v686 = vadd.f32 0.0, %v685
    %687 = vdwg.mxu0
    %v688 = vadd.f32 %v658, %v686
    %v689 = vmul.f32 %v664, %v688
    %v690 = vperm.slane %v660, 0
    %v691 = vmul.f32 %v689, %v690
    %v692 = vadd.f32 %v603, %v691
    %vm693 = vcmp.eq.s32.totalorder %v34, 7
    %v694 = vmul.f32 %v664, %v54
    %v695 = vsel %vm693, 1, 0
    %v696 = vperm.slane %v695, 0
    %vm697 = vcmp.eq.s32.totalorder %v696, 1
    %v698 = vsel %vm697, %v694, 0.0
    %v699 = vadd.f32 %v692, %v698
    %v701 = vsel %vm85, %v655, 0
    %703 = vmatpush.msra.mxu0 0.0
    %704 = vmatpush.msra.mxu0 0.0
    %705 = vmatpush.msra.mxu0 0.0
    %706 = vmatpush.msra.mxu0 0.0
    %707 = vmatpush.msra.mxu0 0.0
    %708 = vmatpush.msra.mxu0 0.0
    %709 = vmatpush.msra.mxu0 0.0
    %710 = vmatpush.msra.mxu0 0.0
    %711 = vmatpush.msra.mxu0 0.0
    %712 = vmatpush.msra.mxu0 0.0
    %713 = vmatpush.msra.mxu0 0.0
    %714 = vmatpush.msra.mxu0 0.0
    %715 = vmatpush.msra.mxu0 0.0
    %716 = vmatpush.msra.mxu0 0.0
    %717 = vmatpush.msra.mxu0 0.0
    %718 = vmatpush.msra.mxu0 %v701
    %719 = vmatmul.f32.gmra.mxu0 %v122
    %v720 = vpop.f32.mrf.mxu0
    %v721 = vadd.f32 0.0, %v720
    %722 = vdwg.mxu0
    %v723 = vsel %vm62, %v658, -inf
    %v724 = vrot.slane %v723, 4
    %v725 = vmax.f32 %v723, %v724
    %v726 = vrot.slane %v725, 2
    %v727 = vmax.f32 %v725, %v726
    %v728 = vrot.slane %v727, 1
    %v729 = vmax.f32 %v727, %v728
    %v730 = vsub.f32 %v658, %v729
    %v731 = vmul.f32 %v730, 1.442695
    %v732 = vpow.pop %v731
    %v733 = vmul.f32 %v721, %v732
    %v734 = vsel %vm62, %v733, -inf
    %v735 = vrot.slane %v734, 4
    %v736 = vmax.f32 %v734, %v735
    %v737 = vrot.slane %v736, 2
    %v738 = vmax.f32 %v736, %v737
    %v739 = vrot.slane %v738, 1
    %v740 = vmax.f32 %v738, %v739
    %v741 = vrcp.pop %v740
    %v742 = vmul.f32 %v733, %v741
    %v743 = vadd.f32 %v656, %v729
    %v744 = vlog2.pop %v741
    %v745 = vmul.f32 %v744, 0.6931472
    %v746 = vsub.f32 %v743, %v745
    %vm747 = vcmp.gt.f32.partialorder %v660, 0.0
    %v748 = vsel %vm747, 1, 0
    %v749 = vperm.slane %v748, 0
    %vm750 = vcmp.eq.s32.totalorder %v749, 1
    %v751 = vsel %vm750, %v742, %v655
    %v752 = vsel %vm747, %v746, %v656
    %v753 = vsel %vm62, %v699, 0.0
    %v754 = vrot.slane %v753, 4
    %v755 = vadd.f32 %v753, %v754
    %v756 = vrot.slane %v755, 2
    %v757 = vadd.f32 %v755, %v756
    %v758 = vrot.slane %v757, 1
    %v759 = vadd.f32 %v757, %v758
    %vm760 = vcmask 4096
    %v761 = vsel %vm760, %v31, -inf
    %v762 = vrot.slane %v761, 4
    %v763 = vmax.f32 %v761, %v762
    %v764 = vrot.slane %v763, 2
    %v765 = vmax.f32 %v763, %v764
    %v766 = vrot.slane %v765, 1
    %v767 = vmax.f32 %v765, %v766
    %v768 = vsub.f32 %v31, %v767
    %v769 = vmul.f32 %v768, 1.442695
    %v770 = vpow.pop %v769
    %772 = vset.pattern.permute.xlu0 0
    %773 = vperm.xlu0 %772, %v770
    %v774 = vpop.permute.xlu0 %773
    %v776 = vmul.f32 %v751, %v774
    %v777 = vsel %vm62, %v776, 0.0
    %v778 = vrot.slane %v777, 4
    %v779 = vadd.f32 %v777, %v778
    %v780 = vrot.slane %v779, 2
    %v781 = vadd.f32 %v779, %v780
    %v782 = vrot.slane %v781, 1
    %v783 = vadd.f32 %v781, %v782
    %785 = vset.pattern.permute.xlu0 0
    %786 = vperm.xlu0 %785, %v767
    %v787 = vpop.permute.xlu0 %786
    %v789 = vadd.f32 %v752, %v787
    %v790 = vlog2.pop %v783
    %v791 = vmul.f32 %v790, 0.6931472
    %v792 = vadd.f32 %v789, %v791
    %v793 = vsub.f32 %v759, %v792
    %vm794 = vcmask 8192
    %795 = vst.msk [vmem:[#allocation2] sm:$0x1] %vm794, %v793
    // Predicated region
    $region34: #{tpu_custom_call.1} parent=1 // pred_check
      _
    $region35: #{tpu_custom_call.1} parent=1 // pred_check_branch
      %797 = sbr.rel (0) target = $region37
    $region36: #{tpu_custom_call.1} parent=1 // pred_region
      %799 = vsyncadd [#allocation3], 0
      %s801 = sshll.u32 [#allocation2], 4
      %s802 = int_to_ptr.vmem [resolvable:$true] %s801
      %s803 = sshll.u32 %s8, 4
      %s804 = int_to_ptr.hbm [resolvable:$true] %s803
      %806 = dma.vmem_to_hbm [thread:$0]  %s802, 16, %s804, [#allocation3]
    $region37: #{tpu_custom_call.1} parent=1 // pred_fallthru
      _
    // Predicated region
    $region38: #{tpu_custom_call.1} parent=1 // pred_check
      _
    $region39: #{tpu_custom_call.1} parent=1 // pred_check_branch
      %808 = sbr.rel (0) target = $region41
    $region40: #{tpu_custom_call.1} parent=1 // pred_region
      %810 = dma.done [#allocation3], 16
    $region41: #{tpu_custom_call.1} parent=1 // pred_fallthru
      _
    %811 = vsyncpa [#allocation3], 1

</llo_original>
